<compile_context>
chip_gen: v7x
topology: tpu7x:2x2x1
jax: 0.10.0
libtpu: 0.0.40
codegen_flags: <defaults>
</compile_context>

<pallas_src>
import jax
import jax.numpy as jnp
from jax import lax
from jax.experimental import pallas as pl
from jax.experimental.pallas import tpu as pltpu
import numpy as np


def _round_up(x, m):
    return (x + m - 1) // m * m


def _crf_kernel(emissions_ref, tags_ref, mask_ref,
                start_ref, end_ref, trans_t_ref, trans_flat_ref,
                llh_ref):
    """Per-batch-tile CRF log-likelihood  llh[b] = score[b] - logZ[b].

    Per grid step (TB = batch tile):
      emissions_ref : (T, TB, K)   f32   time-major
      tags_ref      : (T, TB, 1)   i32
      mask_ref      : (T, TB, 1)   f32 (0/1); mask[0] == 1 for real rows
      start_ref     : (1, K)       f32
      end_ref       : (1, K)       f32
      trans_t_ref   : (K, K)       f32   trans_t[j, i] = trans[i, j]
      trans_flat_ref: (1, K*K)     f32   trans_flat[0, i*K + j] = trans[i, j]
      llh_ref       : (TB, 1)      f32   (padded batch rows are zeroed)
    """
    T, TB, K = emissions_ref.shape
    KK = K * K

    em = emissions_ref[...]               # (T, TB, K)
    tg = tags_ref[...]                    # (T, TB, 1) i32
    mk = mask_ref[...]                    # (T, TB, 1) f32
    start_v = start_ref[...]              # (1, K)
    end_v = end_ref[...]                  # (1, K)
    trans_t = trans_t_ref[...]            # (K, K)
    trans_flat = trans_flat_ref[...]      # (1, KK)

    # ------------- gold-path numerator: fully vectorized over T -------------
    oh = (tg == lax.broadcasted_iota(jnp.int32, (T, TB, K), 2)).astype(jnp.float32)

    # emission scores; mask[0] == 1 by CRF contract so masking every step is exact
    emit_sc = jnp.sum(jnp.sum(oh * em, axis=-1, keepdims=True) * mk, axis=0)   # (TB,1)

    # start transition score
    start_sc = jnp.sum(oh[0] * start_v, axis=-1, keepdims=True)                # (TB,1)

    # transition scores trans[tags[t-1], tags[t]] via flat-index one-hot
    # (no MXU launches; K*K lanes — fine for the small-K regime this targets)
    if T > 1:
        flat_idx = tg[:-1] * K + tg[1:]                                        # (T-1,TB,1)
        oh2 = (flat_idx ==
               lax.broadcasted_iota(jnp.int32, (T - 1, TB, KK), 2)
               ).astype(jnp.float32)                                           # (T-1,TB,KK)
        trans_val = jnp.sum(oh2 * trans_flat, axis=-1, keepdims=True)          # (T-1,TB,1)
        trans_sc = jnp.sum(trans_val * mk[1:], axis=0)                         # (TB,1)
    else:
        trans_sc = jnp.zeros((TB, 1), jnp.float32)

    # end transition via last-token one-hot, precomputed outside the recursion
    seq_ends = jnp.sum(mk, axis=0).astype(jnp.int32) - 1                       # (TB,1)
    sel = (lax.broadcasted_iota(jnp.int32, (T, TB, 1), 0) == seq_ends
           ).astype(jnp.float32)                                               # (T,TB,1)
    last_oh = jnp.sum(sel * oh, axis=0)                                        # (TB,K)
    end_sc = jnp.sum(last_oh * end_v, axis=-1, keepdims=True)                  # (TB,1)

    numerator = start_sc + emit_sc + trans_sc + end_sc                         # (TB,1)

    # ------- normalizer: serial logsumexp recursion (only carries alpha) -------
    alpha0 = start_v + em[0]                                                   # (TB,K)

    def body(t, alpha):
        em_t = emissions_ref[t]                                                # (TB,K)
        mk_t = mask_ref[t]                                                     # (TB,1)
        # next[b,j] = logsumexp_i(alpha[b,i] + trans[i,j]) + em_t[b,j]
        s3 = alpha[:, None, :] + trans_t[None, :, :]                           # (TB,K,K)
        m = jnp.max(s3, axis=-1, keepdims=True)
        lse = jnp.log(jnp.sum(jnp.exp(s3 - m), axis=-1)) + m[..., 0]
        nxt = lse + em_t
        return jnp.where(mk_t > 0.0, nxt, alpha)

    if T <= 64:
        # short static trip-count: fully unroll for LLO scheduling visibility
        alpha = alpha0
        for t in range(1, T):
            alpha = body(t, alpha)
    else:
        alpha = lax.fori_loop(1, T, body, alpha0, unroll=True)

    final = alpha + end_v                                                      # (TB,K)
    m = jnp.max(final, axis=-1, keepdims=True)                                 # (TB,1)
    denom = jnp.log(jnp.sum(jnp.exp(final - m), axis=-1, keepdims=True)) + m   # (TB,1)

    # zero padded batch rows (their mask[0] == 0; real rows have mask[0] == 1)
    llh_ref[...] = (numerator - denom) * mk[0]


@jax.jit
def crf_loss_pallas(emissions, tags, mask,
                    start_transitions, end_transitions, transitions):
    """Mirrors New_Transformer_CRF.forward (batch_first=True):
       loss = -(sum_b llh[b] / sum(mask))."""
    B, T, K = emissions.shape
    TB = 8                                   # batch tile (sublane aligned)
    B_pad = _round_up(B, TB)
    nB = B_pad // TB

    # glue: time-major layout, trailing singleton for tags/mask, batch padding
    em_tm = jnp.transpose(emissions.astype(jnp.float32), (1, 0, 2))      # (T,B,K)
    tg_tm = jnp.transpose(tags.astype(jnp.int32), (1, 0))[..., None]     # (T,B,1)
    mk_tm = jnp.transpose(mask.astype(jnp.float32), (1, 0))[..., None]   # (T,B,1)
    if B_pad != B:
        pad = B_pad - B
        em_tm = jnp.pad(em_tm, ((0, 0), (0, pad), (0, 0)))
        tg_tm = jnp.pad(tg_tm, ((0, 0), (0, pad), (0, 0)))
        mk_tm = jnp.pad(mk_tm, ((0, 0), (0, pad), (0, 0)))

    start2 = start_transitions.reshape(1, K).astype(jnp.float32)
    end2 = end_transitions.reshape(1, K).astype(jnp.float32)
    trans_t = transitions.T.astype(jnp.float32)                 # (K,K)  trans_t[j,i]=trans[i,j]
    trans_flat = transitions.reshape(1, K * K).astype(jnp.float32)

    grid_spec = pltpu.PrefetchScalarGridSpec(
        num_scalar_prefetch=0,
        grid=(nB,),
        in_specs=[
            pl.BlockSpec((T, TB, K), lambda b: (0, b, 0)),      # emissions (streamed per tile)
            pl.BlockSpec((T, TB, 1), lambda b: (0, b, 0)),      # tags
            pl.BlockSpec((T, TB, 1), lambda b: (0, b, 0)),      # mask
            pl.BlockSpec((1, K), lambda b: (0, 0)),             # start (resident)
            pl.BlockSpec((1, K), lambda b: (0, 0)),             # end   (resident)
            pl.BlockSpec((K, K), lambda b: (0, 0)),             # trans^T (resident)
            pl.BlockSpec((1, K * K), lambda b: (0, 0)),         # trans flat (resident)
        ],
        out_specs=pl.BlockSpec((TB, 1), lambda b: (b, 0)),
    )

    cost = pl.CostEstimate(
        flops=int(3 * B_pad * T * K * K + 12 * B_pad * T * K),
        transcendentals=int(B_pad * T * K * K),
        bytes_accessed=int(4 * B_pad * T * (K + 2) + 4 * (2 * K * K + 2 * K) + 4 * B_pad),
    )

    llh = pl.pallas_call(
        _crf_kernel,
        out_shape=jax.ShapeDtypeStruct((B_pad, 1), jnp.float32),
        grid_spec=grid_spec,
        compiler_params=pltpu.CompilerParams(
            dimension_semantics=("parallel",),          # batch tiles shard across TCs (v7x)
            vmem_limit_bytes=32 * 1024 * 1024,          # explicit; safe on v5e/v6e/v7x
        ),
        cost_estimate=cost,
    )(em_tm, tg_tm, mk_tm, start2, end2, trans_t, trans_flat)

    # padded rows were zeroed in-kernel, so a plain sum is exact
    loss = -(jnp.sum(llh) / jnp.sum(mask.astype(jnp.float32)))
    return loss


def crf_loss_reference(emissions, tags, mask,
                       start_transitions, end_transitions, transitions):
    """Pure-JAX reference, transcribed from the PyTorch module (time-major)."""
    B, T, K = emissions.shape
    em = jnp.transpose(emissions, (1, 0, 2)).astype(jnp.float32)   # (T, B, K)
    tg = tags.T                                                    # (T, B)
    mk = mask.astype(jnp.float32).T                                # (T, B)

    # numerator
    score = start_transitions[tg[0]] + em[0, jnp.arange(B), tg[0]]
    for i in range(1, T):
        score = score + transitions[tg[i - 1], tg[i]] * mk[i]
        score = score + em[i, jnp.arange(B), tg[i]] * mk[i]
    seq_ends = mk.astype(jnp.int32).sum(0) - 1
    last_tags = tg[seq_ends, jnp.arange(B)]
    score = score + end_transitions[last_tags]

    # denominator
    alpha = start_transitions + em[0]
    for i in range(1, T):
        nxt = jax.scipy.special.logsumexp(
            alpha[:, :, None] + transitions[None] + em[i][:, None, :], axis=1)
        alpha = jnp.where(mk[i][:, None] > 0, nxt, alpha)
    denom = jax.scipy.special.logsumexp(alpha + end_transitions, axis=1)

    llh = score - denom
    return -(llh.sum() / mask.astype(jnp.float32).sum())


if __name__ == "__main__":
    B, T, K = 4, 8, 5  # batch, seq_len, num_tags

    key = jax.random.PRNGKey(0)
    k_em, k_tags, k_start, k_end, k_trans = jax.random.split(key, 5)

    emissions = jax.random.normal(k_em, (B, T, K), dtype=jnp.float32)
    tags = jax.random.randint(k_tags, (B, T), 0, K, dtype=jnp.int32)

    # lengths: first timestep must be valid for every sequence
    lengths = jnp.array([T, 5, 3, 6], dtype=jnp.int32)
    mask = (jnp.arange(T)[None, :] < lengths[:, None]).astype(jnp.uint8)

    # parameters ~ Uniform(-0.1, 0.1), as in reset_parameters()
    start_transitions = jax.random.uniform(k_start, (K,), jnp.float32, -0.1, 0.1)
    end_transitions = jax.random.uniform(k_end, (K,), jnp.float32, -0.1, 0.1)
    transitions = jax.random.uniform(k_trans, (K, K), jnp.float32, -0.1, 0.1)

    loss = crf_loss_pallas(emissions, tags, mask,
                           start_transitions, end_transitions, transitions)
    loss = jax.block_until_ready(loss)

    loss_ref = crf_loss_reference(emissions, tags, mask,
                                  start_transitions, end_transitions, transitions)

    np.testing.assert_allclose(np.asarray(loss), np.asarray(loss_ref),
                               rtol=1e-4, atol=1e-4)
    print("KERNEL_OK")
</pallas_src>

<mosaic_0001>
module attributes {stable_mosaic.version = 11 : i64} {
  func.func @_crf_kernel(%arg0: i32, %arg1: memref<8x8x5xf32, #tpu.memory_space<vmem>>, %arg2: memref<8x8x1xi32, #tpu.memory_space<vmem>>, %arg3: memref<8x8x1xf32, #tpu.memory_space<vmem>>, %arg4: memref<1x5xf32, #tpu.memory_space<vmem>>, %arg5: memref<1x5xf32, #tpu.memory_space<vmem>>, %arg6: memref<5x5xf32, #tpu.memory_space<vmem>>, %arg7: memref<1x25xf32, #tpu.memory_space<vmem>>, %arg8: memref<8x1xf32, #tpu.memory_space<vmem>>) attributes {dimension_semantics = [#tpu.dimension_semantics<parallel>], iteration_bounds = array<i64: 1>, scalar_prefetch = 0 : i64, scratch_operands = 0 : i64, tpu.core_type = #tpu.core_type<tc>, window_params = [{transform_indices = @transform_0, window_bounds = array<i64: 8, 8, 5>}, {transform_indices = @transform_1, window_bounds = array<i64: 8, 8, 1>}, {transform_indices = @transform_2, window_bounds = array<i64: 8, 8, 1>}, {pipeline_mode = #tpu.pipeline_mode<synchronous>, transform_indices = @transform_3, window_bounds = array<i64: 1, 5>}, {pipeline_mode = #tpu.pipeline_mode<synchronous>, transform_indices = @transform_4, window_bounds = array<i64: 1, 5>}, {pipeline_mode = #tpu.pipeline_mode<synchronous>, transform_indices = @transform_5, window_bounds = array<i64: 5, 5>}, {pipeline_mode = #tpu.pipeline_mode<synchronous>, transform_indices = @transform_6, window_bounds = array<i64: 1, 25>}, {transform_indices = @transform_7, window_bounds = array<i64: 8, 1>}]} {
    %c0 = arith.constant 0 : index
    %c0_0 = arith.constant 0 : index
    %c0_1 = arith.constant 0 : index
    %0 = vector.load %arg1[%c0, %c0_0, %c0_1] : memref<8x8x5xf32, #tpu.memory_space<vmem>>, vector<8x8x5xf32>
    %c0_2 = arith.constant 0 : index
    %c0_3 = arith.constant 0 : index
    %c0_4 = arith.constant 0 : index
    %1 = vector.load %arg2[%c0_2, %c0_3, %c0_4] : memref<8x8x1xi32, #tpu.memory_space<vmem>>, vector<8x8x1xi32>
    %c0_5 = arith.constant 0 : index
    %c0_6 = arith.constant 0 : index
    %c0_7 = arith.constant 0 : index
    %2 = vector.load %arg3[%c0_5, %c0_6, %c0_7] : memref<8x8x1xf32, #tpu.memory_space<vmem>>, vector<8x8x1xf32>
    %c0_8 = arith.constant 0 : index
    %c0_9 = arith.constant 0 : index
    %3 = vector.load %arg4[%c0_8, %c0_9] : memref<1x5xf32, #tpu.memory_space<vmem>>, vector<1x5xf32>
    %c0_10 = arith.constant 0 : index
    %c0_11 = arith.constant 0 : index
    %4 = vector.load %arg5[%c0_10, %c0_11] : memref<1x5xf32, #tpu.memory_space<vmem>>, vector<1x5xf32>
    %c0_12 = arith.constant 0 : index
    %c0_13 = arith.constant 0 : index
    %5 = vector.load %arg6[%c0_12, %c0_13] : memref<5x5xf32, #tpu.memory_space<vmem>>, vector<5x5xf32>
    %c0_14 = arith.constant 0 : index
    %c0_15 = arith.constant 0 : index
    %6 = vector.load %arg7[%c0_14, %c0_15] : memref<1x25xf32, #tpu.memory_space<vmem>>, vector<1x25xf32>
    %7 = tpu.iota {dimensions = array<i32: 2>} : vector<8x8x5xi32>
    %8 = vector.broadcast %1 : vector<8x8x1xi32> to vector<8x8x5xi32>
    %9 = arith.cmpi eq, %8, %7 : vector<8x8x5xi32>
    %10 = arith.extui %9 : vector<8x8x5xi1> to vector<8x8x5xi32>
    %11 = arith.sitofp %10 : vector<8x8x5xi32> to vector<8x8x5xf32>
    %12 = arith.mulf %11, %0 : vector<8x8x5xf32>
    %cst = arith.constant dense<0.000000e+00> : vector<8x8xf32>
    %13 = vector.multi_reduction <add>, %12, %cst [2] : vector<8x8x5xf32> to vector<8x8xf32>
    %14 = vector.shape_cast %13 : vector<8x8xf32> to vector<8x8x1xf32>
    %15 = arith.mulf %14, %2 : vector<8x8x1xf32>
    %cst_16 = arith.constant dense<0.000000e+00> : vector<8x1xf32>
    %16 = vector.multi_reduction <add>, %15, %cst_16 [0] : vector<8x8x1xf32> to vector<8x1xf32>
    %17 = vector.extract_strided_slice %11 {offsets = [0, 0, 0], sizes = [1, 8, 5], strides = [1, 1, 1]} : vector<8x8x5xf32> to vector<1x8x5xf32>
    %18 = vector.shape_cast %17 : vector<1x8x5xf32> to vector<8x5xf32>
    %19 = vector.broadcast %3 : vector<1x5xf32> to vector<8x5xf32>
    %20 = arith.mulf %18, %19 : vector<8x5xf32>
    %cst_17 = arith.constant dense<0.000000e+00> : vector<8xf32>
    %21 = vector.multi_reduction <add>, %20, %cst_17 [1] : vector<8x5xf32> to vector<8xf32>
    %22 = vector.shape_cast %21 : vector<8xf32> to vector<8x1xf32>
    %23 = vector.extract_strided_slice %1 {offsets = [0, 0, 0], sizes = [7, 8, 1], strides = [1, 1, 1]} : vector<8x8x1xi32> to vector<7x8x1xi32>
    %c5_i32 = arith.constant 5 : i32
    %24 = vector.broadcast %c5_i32 : i32 to vector<7x8x1xi32>
    %25 = arith.muli %23, %24 : vector<7x8x1xi32>
    %26 = vector.extract_strided_slice %1 {offsets = [1, 0, 0], sizes = [7, 8, 1], strides = [1, 1, 1]} : vector<8x8x1xi32> to vector<7x8x1xi32>
    %27 = arith.addi %25, %26 : vector<7x8x1xi32>
    %28 = tpu.iota {dimensions = array<i32: 2>} : vector<7x8x25xi32>
    %29 = vector.broadcast %27 : vector<7x8x1xi32> to vector<7x8x25xi32>
    %30 = arith.cmpi eq, %29, %28 : vector<7x8x25xi32>
    %31 = arith.extui %30 : vector<7x8x25xi1> to vector<7x8x25xi32>
    %32 = arith.sitofp %31 : vector<7x8x25xi32> to vector<7x8x25xf32>
    %33 = vector.shape_cast %6 : vector<1x25xf32> to vector<1x1x25xf32>
    %34 = vector.broadcast %33 : vector<1x1x25xf32> to vector<7x8x25xf32>
    %35 = arith.mulf %32, %34 : vector<7x8x25xf32>
    %cst_18 = arith.constant dense<0.000000e+00> : vector<7x8xf32>
    %36 = vector.multi_reduction <add>, %35, %cst_18 [2] : vector<7x8x25xf32> to vector<7x8xf32>
    %37 = vector.shape_cast %36 : vector<7x8xf32> to vector<7x8x1xf32>
    %38 = vector.extract_strided_slice %2 {offsets = [1, 0, 0], sizes = [7, 8, 1], strides = [1, 1, 1]} : vector<8x8x1xf32> to vector<7x8x1xf32>
    %39 = arith.mulf %37, %38 : vector<7x8x1xf32>
    %cst_19 = arith.constant dense<0.000000e+00> : vector<8x1xf32>
    %40 = vector.multi_reduction <add>, %39, %cst_19 [0] : vector<7x8x1xf32> to vector<8x1xf32>
    %cst_20 = arith.constant dense<0.000000e+00> : vector<8x1xf32>
    %41 = vector.multi_reduction <add>, %2, %cst_20 [0] : vector<8x8x1xf32> to vector<8x1xf32>
    %42 = arith.fptosi %41 : vector<8x1xf32> to vector<8x1xi32>
    %c1_i32 = arith.constant 1 : i32
    %43 = vector.broadcast %c1_i32 : i32 to vector<8x1xi32>
    %44 = arith.subi %42, %43 : vector<8x1xi32>
    %45 = tpu.iota {dimensions = array<i32: 0>} : vector<8x8x1xi32>
    %46 = vector.shape_cast %44 : vector<8x1xi32> to vector<1x8x1xi32>
    %47 = vector.broadcast %46 : vector<1x8x1xi32> to vector<8x8x1xi32>
    %48 = arith.cmpi eq, %45, %47 : vector<8x8x1xi32>
    %49 = arith.extui %48 : vector<8x8x1xi1> to vector<8x8x1xi32>
    %50 = arith.sitofp %49 : vector<8x8x1xi32> to vector<8x8x1xf32>
    %51 = vector.broadcast %50 : vector<8x8x1xf32> to vector<8x8x5xf32>
    %52 = arith.mulf %51, %11 : vector<8x8x5xf32>
    %cst_21 = arith.constant dense<0.000000e+00> : vector<8x5xf32>
    %53 = vector.multi_reduction <add>, %52, %cst_21 [0] : vector<8x8x5xf32> to vector<8x5xf32>
    %54 = vector.broadcast %4 : vector<1x5xf32> to vector<8x5xf32>
    %55 = arith.mulf %53, %54 : vector<8x5xf32>
    %cst_22 = arith.constant dense<0.000000e+00> : vector<8xf32>
    %56 = vector.multi_reduction <add>, %55, %cst_22 [1] : vector<8x5xf32> to vector<8xf32>
    %57 = vector.shape_cast %56 : vector<8xf32> to vector<8x1xf32>
    %58 = arith.addf %22, %16 : vector<8x1xf32>
    %59 = arith.addf %58, %40 : vector<8x1xf32>
    %60 = arith.addf %59, %57 : vector<8x1xf32>
    %61 = vector.extract_strided_slice %0 {offsets = [0, 0, 0], sizes = [1, 8, 5], strides = [1, 1, 1]} : vector<8x8x5xf32> to vector<1x8x5xf32>
    %62 = vector.shape_cast %61 : vector<1x8x5xf32> to vector<8x5xf32>
    %63 = vector.broadcast %3 : vector<1x5xf32> to vector<8x5xf32>
    %64 = arith.addf %63, %62 : vector<8x5xf32>
    %c1 = arith.constant 1 : index
    %c0_23 = arith.constant 0 : index
    %c0_24 = arith.constant 0 : index
    %65 = vector.load %arg1[%c1, %c0_23, %c0_24] : memref<8x8x5xf32, #tpu.memory_space<vmem>>, vector<1x8x5xf32>
    %66 = vector.shape_cast %65 : vector<1x8x5xf32> to vector<8x5xf32>
    %c1_25 = arith.constant 1 : index
    %c0_26 = arith.constant 0 : index
    %c0_27 = arith.constant 0 : index
    %67 = vector.load %arg3[%c1_25, %c0_26, %c0_27] : memref<8x8x1xf32, #tpu.memory_space<vmem>>, vector<1x8x1xf32>
    %68 = vector.shape_cast %67 : vector<1x8x1xf32> to vector<8x1xf32>
    %69 = vector.shape_cast %64 : vector<8x5xf32> to vector<8x1x5xf32>
    %70 = vector.shape_cast %5 : vector<5x5xf32> to vector<1x5x5xf32>
    %71 = vector.broadcast %69 : vector<8x1x5xf32> to vector<8x5x5xf32>
    %72 = vector.broadcast %70 : vector<1x5x5xf32> to vector<8x5x5xf32>
    %73 = arith.addf %71, %72 : vector<8x5x5xf32>
    %cst_28 = arith.constant dense<0xFF800000> : vector<8x5xf32>
    %74 = vector.multi_reduction <maximumf>, %73, %cst_28 [2] : vector<8x5x5xf32> to vector<8x5xf32>
    %75 = vector.shape_cast %74 : vector<8x5xf32> to vector<8x5x1xf32>
    %76 = vector.broadcast %75 : vector<8x5x1xf32> to vector<8x5x5xf32>
    %77 = arith.subf %73, %76 : vector<8x5x5xf32>
    %78 = math.exp %77 : vector<8x5x5xf32>
    %cst_29 = arith.constant dense<0.000000e+00> : vector<8x5xf32>
    %79 = vector.multi_reduction <add>, %78, %cst_29 [2] : vector<8x5x5xf32> to vector<8x5xf32>
    %80 = math.log %79 : vector<8x5xf32>
    %81 = vector.shape_cast %75 : vector<8x5x1xf32> to vector<8x5xf32>
    %82 = arith.addf %80, %81 : vector<8x5xf32>
    %83 = arith.addf %82, %66 : vector<8x5xf32>
    %cst_30 = arith.constant 0.000000e+00 : f32
    %84 = vector.broadcast %cst_30 : f32 to vector<8x1xf32>
    %85 = arith.cmpf ogt, %68, %84 : vector<8x1xf32>
    %86 = vector.shape_cast %85 : vector<8x1xi1> to vector<8x1xi1>
    %87 = vector.broadcast %86 : vector<8x1xi1> to vector<8x5xi1>
    %88 = arith.select %87, %83, %64 : vector<8x5xi1>, vector<8x5xf32>
    %c2 = arith.constant 2 : index
    %c0_31 = arith.constant 0 : index
    %c0_32 = arith.constant 0 : index
    %89 = vector.load %arg1[%c2, %c0_31, %c0_32] : memref<8x8x5xf32, #tpu.memory_space<vmem>>, vector<1x8x5xf32>
    %90 = vector.shape_cast %89 : vector<1x8x5xf32> to vector<8x5xf32>
    %c2_33 = arith.constant 2 : index
    %c0_34 = arith.constant 0 : index
    %c0_35 = arith.constant 0 : index
    %91 = vector.load %arg3[%c2_33, %c0_34, %c0_35] : memref<8x8x1xf32, #tpu.memory_space<vmem>>, vector<1x8x1xf32>
    %92 = vector.shape_cast %91 : vector<1x8x1xf32> to vector<8x1xf32>
    %93 = vector.shape_cast %88 : vector<8x5xf32> to vector<8x1x5xf32>
    %94 = vector.shape_cast %5 : vector<5x5xf32> to vector<1x5x5xf32>
    %95 = vector.broadcast %93 : vector<8x1x5xf32> to vector<8x5x5xf32>
    %96 = vector.broadcast %94 : vector<1x5x5xf32> to vector<8x5x5xf32>
    %97 = arith.addf %95, %96 : vector<8x5x5xf32>
    %cst_36 = arith.constant dense<0xFF800000> : vector<8x5xf32>
    %98 = vector.multi_reduction <maximumf>, %97, %cst_36 [2] : vector<8x5x5xf32> to vector<8x5xf32>
    %99 = vector.shape_cast %98 : vector<8x5xf32> to vector<8x5x1xf32>
    %100 = vector.broadcast %99 : vector<8x5x1xf32> to vector<8x5x5xf32>
    %101 = arith.subf %97, %100 : vector<8x5x5xf32>
    %102 = math.exp %101 : vector<8x5x5xf32>
    %cst_37 = arith.constant dense<0.000000e+00> : vector<8x5xf32>
    %103 = vector.multi_reduction <add>, %102, %cst_37 [2] : vector<8x5x5xf32> to vector<8x5xf32>
    %104 = math.log %103 : vector<8x5xf32>
    %105 = vector.shape_cast %99 : vector<8x5x1xf32> to vector<8x5xf32>
    %106 = arith.addf %104, %105 : vector<8x5xf32>
    %107 = arith.addf %106, %90 : vector<8x5xf32>
    %cst_38 = arith.constant 0.000000e+00 : f32
    %108 = vector.broadcast %cst_38 : f32 to vector<8x1xf32>
    %109 = arith.cmpf ogt, %92, %108 : vector<8x1xf32>
    %110 = vector.shape_cast %109 : vector<8x1xi1> to vector<8x1xi1>
    %111 = vector.broadcast %110 : vector<8x1xi1> to vector<8x5xi1>
    %112 = arith.select %111, %107, %88 : vector<8x5xi1>, vector<8x5xf32>
    %c3 = arith.constant 3 : index
    %c0_39 = arith.constant 0 : index
    %c0_40 = arith.constant 0 : index
    %113 = vector.load %arg1[%c3, %c0_39, %c0_40] : memref<8x8x5xf32, #tpu.memory_space<vmem>>, vector<1x8x5xf32>
    %114 = vector.shape_cast %113 : vector<1x8x5xf32> to vector<8x5xf32>
    %c3_41 = arith.constant 3 : index
    %c0_42 = arith.constant 0 : index
    %c0_43 = arith.constant 0 : index
    %115 = vector.load %arg3[%c3_41, %c0_42, %c0_43] : memref<8x8x1xf32, #tpu.memory_space<vmem>>, vector<1x8x1xf32>
    %116 = vector.shape_cast %115 : vector<1x8x1xf32> to vector<8x1xf32>
    %117 = vector.shape_cast %112 : vector<8x5xf32> to vector<8x1x5xf32>
    %118 = vector.shape_cast %5 : vector<5x5xf32> to vector<1x5x5xf32>
    %119 = vector.broadcast %117 : vector<8x1x5xf32> to vector<8x5x5xf32>
    %120 = vector.broadcast %118 : vector<1x5x5xf32> to vector<8x5x5xf32>
    %121 = arith.addf %119, %120 : vector<8x5x5xf32>
    %cst_44 = arith.constant dense<0xFF800000> : vector<8x5xf32>
    %122 = vector.multi_reduction <maximumf>, %121, %cst_44 [2] : vector<8x5x5xf32> to vector<8x5xf32>
    %123 = vector.shape_cast %122 : vector<8x5xf32> to vector<8x5x1xf32>
    %124 = vector.broadcast %123 : vector<8x5x1xf32> to vector<8x5x5xf32>
    %125 = arith.subf %121, %124 : vector<8x5x5xf32>
    %126 = math.exp %125 : vector<8x5x5xf32>
    %cst_45 = arith.constant dense<0.000000e+00> : vector<8x5xf32>
    %127 = vector.multi_reduction <add>, %126, %cst_45 [2] : vector<8x5x5xf32> to vector<8x5xf32>
    %128 = math.log %127 : vector<8x5xf32>
    %129 = vector.shape_cast %123 : vector<8x5x1xf32> to vector<8x5xf32>
    %130 = arith.addf %128, %129 : vector<8x5xf32>
    %131 = arith.addf %130, %114 : vector<8x5xf32>
    %cst_46 = arith.constant 0.000000e+00 : f32
    %132 = vector.broadcast %cst_46 : f32 to vector<8x1xf32>
    %133 = arith.cmpf ogt, %116, %132 : vector<8x1xf32>
    %134 = vector.shape_cast %133 : vector<8x1xi1> to vector<8x1xi1>
    %135 = vector.broadcast %134 : vector<8x1xi1> to vector<8x5xi1>
    %136 = arith.select %135, %131, %112 : vector<8x5xi1>, vector<8x5xf32>
    %c4 = arith.constant 4 : index
    %c0_47 = arith.constant 0 : index
    %c0_48 = arith.constant 0 : index
    %137 = vector.load %arg1[%c4, %c0_47, %c0_48] : memref<8x8x5xf32, #tpu.memory_space<vmem>>, vector<1x8x5xf32>
    %138 = vector.shape_cast %137 : vector<1x8x5xf32> to vector<8x5xf32>
    %c4_49 = arith.constant 4 : index
    %c0_50 = arith.constant 0 : index
    %c0_51 = arith.constant 0 : index
    %139 = vector.load %arg3[%c4_49, %c0_50, %c0_51] : memref<8x8x1xf32, #tpu.memory_space<vmem>>, vector<1x8x1xf32>
    %140 = vector.shape_cast %139 : vector<1x8x1xf32> to vector<8x1xf32>
    %141 = vector.shape_cast %136 : vector<8x5xf32> to vector<8x1x5xf32>
    %142 = vector.shape_cast %5 : vector<5x5xf32> to vector<1x5x5xf32>
    %143 = vector.broadcast %141 : vector<8x1x5xf32> to vector<8x5x5xf32>
    %144 = vector.broadcast %142 : vector<1x5x5xf32> to vector<8x5x5xf32>
    %145 = arith.addf %143, %144 : vector<8x5x5xf32>
    %cst_52 = arith.constant dense<0xFF800000> : vector<8x5xf32>
    %146 = vector.multi_reduction <maximumf>, %145, %cst_52 [2] : vector<8x5x5xf32> to vector<8x5xf32>
    %147 = vector.shape_cast %146 : vector<8x5xf32> to vector<8x5x1xf32>
    %148 = vector.broadcast %147 : vector<8x5x1xf32> to vector<8x5x5xf32>
    %149 = arith.subf %145, %148 : vector<8x5x5xf32>
    %150 = math.exp %149 : vector<8x5x5xf32>
    %cst_53 = arith.constant dense<0.000000e+00> : vector<8x5xf32>
    %151 = vector.multi_reduction <add>, %150, %cst_53 [2] : vector<8x5x5xf32> to vector<8x5xf32>
    %152 = math.log %151 : vector<8x5xf32>
    %153 = vector.shape_cast %147 : vector<8x5x1xf32> to vector<8x5xf32>
    %154 = arith.addf %152, %153 : vector<8x5xf32>
    %155 = arith.addf %154, %138 : vector<8x5xf32>
    %cst_54 = arith.constant 0.000000e+00 : f32
    %156 = vector.broadcast %cst_54 : f32 to vector<8x1xf32>
    %157 = arith.cmpf ogt, %140, %156 : vector<8x1xf32>
    %158 = vector.shape_cast %157 : vector<8x1xi1> to vector<8x1xi1>
    %159 = vector.broadcast %158 : vector<8x1xi1> to vector<8x5xi1>
    %160 = arith.select %159, %155, %136 : vector<8x5xi1>, vector<8x5xf32>
    %c5 = arith.constant 5 : index
    %c0_55 = arith.constant 0 : index
    %c0_56 = arith.constant 0 : index
    %161 = vector.load %arg1[%c5, %c0_55, %c0_56] : memref<8x8x5xf32, #tpu.memory_space<vmem>>, vector<1x8x5xf32>
    %162 = vector.shape_cast %161 : vector<1x8x5xf32> to vector<8x5xf32>
    %c5_57 = arith.constant 5 : index
    %c0_58 = arith.constant 0 : index
    %c0_59 = arith.constant 0 : index
    %163 = vector.load %arg3[%c5_57, %c0_58, %c0_59] : memref<8x8x1xf32, #tpu.memory_space<vmem>>, vector<1x8x1xf32>
    %164 = vector.shape_cast %163 : vector<1x8x1xf32> to vector<8x1xf32>
    %165 = vector.shape_cast %160 : vector<8x5xf32> to vector<8x1x5xf32>
    %166 = vector.shape_cast %5 : vector<5x5xf32> to vector<1x5x5xf32>
    %167 = vector.broadcast %165 : vector<8x1x5xf32> to vector<8x5x5xf32>
    %168 = vector.broadcast %166 : vector<1x5x5xf32> to vector<8x5x5xf32>
    %169 = arith.addf %167, %168 : vector<8x5x5xf32>
    %cst_60 = arith.constant dense<0xFF800000> : vector<8x5xf32>
    %170 = vector.multi_reduction <maximumf>, %169, %cst_60 [2] : vector<8x5x5xf32> to vector<8x5xf32>
    %171 = vector.shape_cast %170 : vector<8x5xf32> to vector<8x5x1xf32>
    %172 = vector.broadcast %171 : vector<8x5x1xf32> to vector<8x5x5xf32>
    %173 = arith.subf %169, %172 : vector<8x5x5xf32>
    %174 = math.exp %173 : vector<8x5x5xf32>
    %cst_61 = arith.constant dense<0.000000e+00> : vector<8x5xf32>
    %175 = vector.multi_reduction <add>, %174, %cst_61 [2] : vector<8x5x5xf32> to vector<8x5xf32>
    %176 = math.log %175 : vector<8x5xf32>
    %177 = vector.shape_cast %171 : vector<8x5x1xf32> to vector<8x5xf32>
    %178 = arith.addf %176, %177 : vector<8x5xf32>
    %179 = arith.addf %178, %162 : vector<8x5xf32>
    %cst_62 = arith.constant 0.000000e+00 : f32
    %180 = vector.broadcast %cst_62 : f32 to vector<8x1xf32>
    %181 = arith.cmpf ogt, %164, %180 : vector<8x1xf32>
    %182 = vector.shape_cast %181 : vector<8x1xi1> to vector<8x1xi1>
    %183 = vector.broadcast %182 : vector<8x1xi1> to vector<8x5xi1>
    %184 = arith.select %183, %179, %160 : vector<8x5xi1>, vector<8x5xf32>
    %c6 = arith.constant 6 : index
    %c0_63 = arith.constant 0 : index
    %c0_64 = arith.constant 0 : index
    %185 = vector.load %arg1[%c6, %c0_63, %c0_64] : memref<8x8x5xf32, #tpu.memory_space<vmem>>, vector<1x8x5xf32>
    %186 = vector.shape_cast %185 : vector<1x8x5xf32> to vector<8x5xf32>
    %c6_65 = arith.constant 6 : index
    %c0_66 = arith.constant 0 : index
    %c0_67 = arith.constant 0 : index
    %187 = vector.load %arg3[%c6_65, %c0_66, %c0_67] : memref<8x8x1xf32, #tpu.memory_space<vmem>>, vector<1x8x1xf32>
    %188 = vector.shape_cast %187 : vector<1x8x1xf32> to vector<8x1xf32>
    %189 = vector.shape_cast %184 : vector<8x5xf32> to vector<8x1x5xf32>
    %190 = vector.shape_cast %5 : vector<5x5xf32> to vector<1x5x5xf32>
    %191 = vector.broadcast %189 : vector<8x1x5xf32> to vector<8x5x5xf32>
    %192 = vector.broadcast %190 : vector<1x5x5xf32> to vector<8x5x5xf32>
    %193 = arith.addf %191, %192 : vector<8x5x5xf32>
    %cst_68 = arith.constant dense<0xFF800000> : vector<8x5xf32>
    %194 = vector.multi_reduction <maximumf>, %193, %cst_68 [2] : vector<8x5x5xf32> to vector<8x5xf32>
    %195 = vector.shape_cast %194 : vector<8x5xf32> to vector<8x5x1xf32>
    %196 = vector.broadcast %195 : vector<8x5x1xf32> to vector<8x5x5xf32>
    %197 = arith.subf %193, %196 : vector<8x5x5xf32>
    %198 = math.exp %197 : vector<8x5x5xf32>
    %cst_69 = arith.constant dense<0.000000e+00> : vector<8x5xf32>
    %199 = vector.multi_reduction <add>, %198, %cst_69 [2] : vector<8x5x5xf32> to vector<8x5xf32>
    %200 = math.log %199 : vector<8x5xf32>
    %201 = vector.shape_cast %195 : vector<8x5x1xf32> to vector<8x5xf32>
    %202 = arith.addf %200, %201 : vector<8x5xf32>
    %203 = arith.addf %202, %186 : vector<8x5xf32>
    %cst_70 = arith.constant 0.000000e+00 : f32
    %204 = vector.broadcast %cst_70 : f32 to vector<8x1xf32>
    %205 = arith.cmpf ogt, %188, %204 : vector<8x1xf32>
    %206 = vector.shape_cast %205 : vector<8x1xi1> to vector<8x1xi1>
    %207 = vector.broadcast %206 : vector<8x1xi1> to vector<8x5xi1>
    %208 = arith.select %207, %203, %184 : vector<8x5xi1>, vector<8x5xf32>
    %c7 = arith.constant 7 : index
    %c0_71 = arith.constant 0 : index
    %c0_72 = arith.constant 0 : index
    %209 = vector.load %arg1[%c7, %c0_71, %c0_72] : memref<8x8x5xf32, #tpu.memory_space<vmem>>, vector<1x8x5xf32>
    %210 = vector.shape_cast %209 : vector<1x8x5xf32> to vector<8x5xf32>
    %c7_73 = arith.constant 7 : index
    %c0_74 = arith.constant 0 : index
    %c0_75 = arith.constant 0 : index
    %211 = vector.load %arg3[%c7_73, %c0_74, %c0_75] : memref<8x8x1xf32, #tpu.memory_space<vmem>>, vector<1x8x1xf32>
    %212 = vector.shape_cast %211 : vector<1x8x1xf32> to vector<8x1xf32>
    %213 = vector.shape_cast %208 : vector<8x5xf32> to vector<8x1x5xf32>
    %214 = vector.shape_cast %5 : vector<5x5xf32> to vector<1x5x5xf32>
    %215 = vector.broadcast %213 : vector<8x1x5xf32> to vector<8x5x5xf32>
    %216 = vector.broadcast %214 : vector<1x5x5xf32> to vector<8x5x5xf32>
    %217 = arith.addf %215, %216 : vector<8x5x5xf32>
    %cst_76 = arith.constant dense<0xFF800000> : vector<8x5xf32>
    %218 = vector.multi_reduction <maximumf>, %217, %cst_76 [2] : vector<8x5x5xf32> to vector<8x5xf32>
    %219 = vector.shape_cast %218 : vector<8x5xf32> to vector<8x5x1xf32>
    %220 = vector.broadcast %219 : vector<8x5x1xf32> to vector<8x5x5xf32>
    %221 = arith.subf %217, %220 : vector<8x5x5xf32>
    %222 = math.exp %221 : vector<8x5x5xf32>
    %cst_77 = arith.constant dense<0.000000e+00> : vector<8x5xf32>
    %223 = vector.multi_reduction <add>, %222, %cst_77 [2] : vector<8x5x5xf32> to vector<8x5xf32>
    %224 = math.log %223 : vector<8x5xf32>
    %225 = vector.shape_cast %219 : vector<8x5x1xf32> to vector<8x5xf32>
    %226 = arith.addf %224, %225 : vector<8x5xf32>
    %227 = arith.addf %226, %210 : vector<8x5xf32>
    %cst_78 = arith.constant 0.000000e+00 : f32
    %228 = vector.broadcast %cst_78 : f32 to vector<8x1xf32>
    %229 = arith.cmpf ogt, %212, %228 : vector<8x1xf32>
    %230 = vector.shape_cast %229 : vector<8x1xi1> to vector<8x1xi1>
    %231 = vector.broadcast %230 : vector<8x1xi1> to vector<8x5xi1>
    %232 = arith.select %231, %227, %208 : vector<8x5xi1>, vector<8x5xf32>
    %233 = vector.broadcast %4 : vector<1x5xf32> to vector<8x5xf32>
    %234 = arith.addf %232, %233 : vector<8x5xf32>
    %cst_79 = arith.constant dense<0xFF800000> : vector<8xf32>
    %235 = vector.multi_reduction <maximumf>, %234, %cst_79 [1] : vector<8x5xf32> to vector<8xf32>
    %236 = vector.shape_cast %235 : vector<8xf32> to vector<8x1xf32>
    %237 = vector.broadcast %236 : vector<8x1xf32> to vector<8x5xf32>
    %238 = arith.subf %234, %237 : vector<8x5xf32>
    %239 = math.exp %238 : vector<8x5xf32>
    %cst_80 = arith.constant dense<0.000000e+00> : vector<8xf32>
    %240 = vector.multi_reduction <add>, %239, %cst_80 [1] : vector<8x5xf32> to vector<8xf32>
    %241 = vector.shape_cast %240 : vector<8xf32> to vector<8x1xf32>
    %242 = math.log %241 : vector<8x1xf32>
    %243 = arith.addf %242, %236 : vector<8x1xf32>
    %244 = arith.subf %60, %243 : vector<8x1xf32>
    %245 = vector.extract_strided_slice %2 {offsets = [0, 0, 0], sizes = [1, 8, 1], strides = [1, 1, 1]} : vector<8x8x1xf32> to vector<1x8x1xf32>
    %246 = vector.shape_cast %245 : vector<1x8x1xf32> to vector<8x1xf32>
    %247 = arith.mulf %244, %246 : vector<8x1xf32>
    %c0_81 = arith.constant 0 : index
    %c0_82 = arith.constant 0 : index
    %248 = vector.load %arg8[%c0_81, %c0_82] : memref<8x1xf32, #tpu.memory_space<vmem>>, vector<8x1xf32>
    tpu.vector_store %arg8[%c0_81, %c0_82], %247 {strides = array<i32>} : memref<8x1xf32, #tpu.memory_space<vmem>>, vector<8x1xf32>,
    return
  }
  func.func @transform_0(%arg0: i32) -> (i32, i32, i32) {
    %c0_i32 = arith.constant 0 : i32
    %c0_i32_0 = arith.constant 0 : i32
    %c0_i32_1 = arith.constant 0 : i32
    return %c0_i32, %arg0, %c0_i32_0 : i32, i32, i32
  }
  func.func @transform_1(%arg0: i32) -> (i32, i32, i32) {
    %c0_i32 = arith.constant 0 : i32
    %c0_i32_0 = arith.constant 0 : i32
    %c0_i32_1 = arith.constant 0 : i32
    return %c0_i32, %arg0, %c0_i32_0 : i32, i32, i32
  }
  func.func @transform_2(%arg0: i32) -> (i32, i32, i32) {
    %c0_i32 = arith.constant 0 : i32
    %c0_i32_0 = arith.constant 0 : i32
    %c0_i32_1 = arith.constant 0 : i32
    return %c0_i32, %arg0, %c0_i32_0 : i32, i32, i32
  }
  func.func @transform_3(%arg0: i32) -> (i32, i32) {
    %c0_i32 = arith.constant 0 : i32
    %c0_i32_0 = arith.constant 0 : i32
    %c0_i32_1 = arith.constant 0 : i32
    return %c0_i32, %c0_i32_0 : i32, i32
  }
  func.func @transform_4(%arg0: i32) -> (i32, i32) {
    %c0_i32 = arith.constant 0 : i32
    %c0_i32_0 = arith.constant 0 : i32
    %c0_i32_1 = arith.constant 0 : i32
    return %c0_i32, %c0_i32_0 : i32, i32
  }
  func.func @transform_5(%arg0: i32) -> (i32, i32) {
    %c0_i32 = arith.constant 0 : i32
    %c0_i32_0 = arith.constant 0 : i32
    %c0_i32_1 = arith.constant 0 : i32
    return %c0_i32, %c0_i32_0 : i32, i32
  }
  func.func @transform_6(%arg0: i32) -> (i32, i32) {
    %c0_i32 = arith.constant 0 : i32
    %c0_i32_0 = arith.constant 0 : i32
    %c0_i32_1 = arith.constant 0 : i32
    return %c0_i32, %c0_i32_0 : i32, i32
  }
  func.func @transform_7(%arg0: i32) -> (i32, i32) {
    %c0_i32 = arith.constant 0 : i32
    %c0_i32_0 = arith.constant 0 : i32
    return %arg0, %c0_i32 : i32, i32
  }
}

</mosaic_0001>

<llo_original>
// kernel: crf_loss_pallas.1
$region0: #{crf_loss_pallas.1}
  #allocation0 [shape = 'u32[]', space=smem, size = 0x4, offset = 0x4, fixed_abs, tag = 'smem constant byte address 0x4 - core index']
  #allocation1 [shape = 'u32[144,128]{1,0:T(1,128)}', space=vmem, size = 0x12000, scoped, tag = 'internal scratch']
  %s0 = inlined_call_operand.vmem [shape: f32[8,8,5], index: 0, kind: input, shape index: {}]
  %s1 = inlined_call_operand.vmem [shape: s32[8,8,1], index: 1, kind: input, shape index: {}]
  %s2 = inlined_call_operand.vmem [shape: f32[8,8,1], index: 2, kind: input, shape index: {}]
  %s3 = inlined_call_operand.vmem [shape: f32[1,5], index: 3, kind: input, shape index: {}]
  %s4 = inlined_call_operand.vmem [shape: f32[1,5], index: 4, kind: input, shape index: {}]
  %s5 = inlined_call_operand.vmem [shape: f32[5,5], index: 5, kind: input, shape index: {}]
  %s6 = inlined_call_operand.vmem [shape: f32[1,25], index: 6, kind: input, shape index: {}]
  %s7 = inlined_call_operand.vmem [shape: f32[8,1], index: 7, kind: output, shape index: {}]
  %s8 = sld [smem:[#allocation0]]
  $region38: #{crf_loss_pallas.1} parent=0
    _
  %s10 = ssub.s32 1, %s8
  %s11 = scalar_select 0, %s10, %s8
  // Predicated region
  $region2: #{crf_loss_pallas.1} parent=0 // pred_check
    _
  $region3: #{crf_loss_pallas.1} parent=0 // pred_check_branch
    %13 = sbr.rel (0) target = $region5
  $region4: #{crf_loss_pallas.1} parent=0 // pred_region
    _
  $region5: #{crf_loss_pallas.1} parent=0 // pred_fallthru
    _
  // Predicated region
  $region6: #{crf_loss_pallas.1} parent=0 // pred_check
    _
  $region7: #{crf_loss_pallas.1} parent=0 // pred_check_branch
    %15 = sbr.rel (0) target = $region9
  $region8: #{crf_loss_pallas.1} parent=0 // pred_region
    _
  $region9: #{crf_loss_pallas.1} parent=0 // pred_fallthru
    _
  // Predicated region
  $region10: #{crf_loss_pallas.1} parent=0 // pred_check
    _
  $region11: #{crf_loss_pallas.1} parent=0 // pred_check_branch
    %17 = sbr.rel (0) target = $region13
  $region12: #{crf_loss_pallas.1} parent=0 // pred_region
    _
  $region13: #{crf_loss_pallas.1} parent=0 // pred_fallthru
    _
  // Predicated region
  $region14: #{crf_loss_pallas.1} parent=0 // pred_check
    _
  $region15: #{crf_loss_pallas.1} parent=0 // pred_check_branch
    %19 = sbr.rel (0) target = $region17
  $region16: #{crf_loss_pallas.1} parent=0 // pred_region
    _
  $region17: #{crf_loss_pallas.1} parent=0 // pred_fallthru
    _
  // Predicated region
  $region18: #{crf_loss_pallas.1} parent=0 // pred_check
    _
  $region19: #{crf_loss_pallas.1} parent=0 // pred_check_branch
    %21 = sbr.rel (0) target = $region21
  $region20: #{crf_loss_pallas.1} parent=0 // pred_region
    _
  $region21: #{crf_loss_pallas.1} parent=0 // pred_fallthru
    _
  // Predicated region
  $region22: #{crf_loss_pallas.1} parent=0 // pred_check
    _
  $region23: #{crf_loss_pallas.1} parent=0 // pred_check_branch
    %23 = sbr.rel (0) target = $region25
  $region24: #{crf_loss_pallas.1} parent=0 // pred_region
    _
  $region25: #{crf_loss_pallas.1} parent=0 // pred_fallthru
    _
  // Predicated region
  $region26: #{crf_loss_pallas.1} parent=0 // pred_check
    _
  $region27: #{crf_loss_pallas.1} parent=0 // pred_check_branch
    %25 = sbr.rel (0) target = $region29
  $region28: #{crf_loss_pallas.1} parent=0 // pred_region
    _
  $region29: #{crf_loss_pallas.1} parent=0 // pred_fallthru
    _
  %v26 = vld [vmem:[%s0] sm:$0xff]
  %v27 = vld [vmem:[%s0 + $0x8] sm:$0xff]
  %v28 = vld [vmem:[%s0 + $0x10] sm:$0xff]
  %v29 = vld [vmem:[%s0 + $0x18] sm:$0xff]
  %v30 = vld [vmem:[%s0 + $0x20] sm:$0xff]
  %v31 = vld [vmem:[%s0 + $0x28] sm:$0xff]
  %v32 = vld [vmem:[%s0 + $0x30] sm:$0xff]
  %v33 = vld [vmem:[%s0 + $0x38] sm:$0xff]
  %v34 = vld [vmem:[%s1] sm:$0xff]
  %v35 = vld [vmem:[%s1 + $0x8] sm:$0xff]
  %v36 = vld [vmem:[%s1 + $0x10] sm:$0xff]
  %v37 = vld [vmem:[%s1 + $0x18] sm:$0xff]
  %v38 = vld [vmem:[%s1 + $0x20] sm:$0xff]
  %v39 = vld [vmem:[%s1 + $0x28] sm:$0xff]
  %v40 = vld [vmem:[%s1 + $0x30] sm:$0xff]
  %v41 = vld [vmem:[%s1 + $0x38] sm:$0xff]
  %v42 = vld [vmem:[%s2] sm:$0xff]
  %v43 = vld [vmem:[%s2 + $0x8] sm:$0xff]
  %v44 = vld [vmem:[%s2 + $0x10] sm:$0xff]
  %v45 = vld [vmem:[%s2 + $0x18] sm:$0xff]
  %v46 = vld [vmem:[%s2 + $0x20] sm:$0xff]
  %v47 = vld [vmem:[%s2 + $0x28] sm:$0xff]
  %v48 = vld [vmem:[%s2 + $0x30] sm:$0xff]
  %v49 = vld [vmem:[%s2 + $0x38] sm:$0xff]
  %v50 = vld [vmem:[%s3] sm:$0x1]
  %v51 = vld [vmem:[%s4] sm:$0x1]
  %v52 = vld [vmem:[%s5] sm:$0x1f]
  %v53 = vld [vmem:[%s6] sm:$0x1]
  %v54 = vlaneseq
  %v55 = vand.u32 %v54, 127
  %56 = vset.pattern.permute.xlu0 0
  %57 = vperm.xlu0 %56, %v34
  %v58 = vpop.permute.xlu0 %57
  %59 = vset.pattern.permute.xlu0 0
  %60 = vperm.xlu0 %59, %v35
  %v61 = vpop.permute.xlu0 %60
  %62 = vset.pattern.permute.xlu0 0
  %63 = vperm.xlu0 %62, %v36
  %v64 = vpop.permute.xlu0 %63
  %65 = vset.pattern.permute.xlu0 0
  %66 = vperm.xlu0 %65, %v37
  %v67 = vpop.permute.xlu0 %66
  %68 = vset.pattern.permute.xlu0 0
  %69 = vperm.xlu0 %68, %v38
  %v70 = vpop.permute.xlu0 %69
  %71 = vset.pattern.permute.xlu0 0
  %72 = vperm.xlu0 %71, %v39
  %v73 = vpop.permute.xlu0 %72
  %74 = vset.pattern.permute.xlu0 0
  %75 = vperm.xlu0 %74, %v40
  %v76 = vpop.permute.xlu0 %75
  %77 = vset.pattern.permute.xlu0 0
  %78 = vperm.xlu0 %77, %v41
  %v79 = vpop.permute.xlu0 %78
  %vm80 = vcmp.eq.s32.totalorder %v58, %v55
  %vm81 = vcmp.eq.s32.totalorder %v61, %v55
  %vm82 = vcmp.eq.s32.totalorder %v64, %v55
  %vm83 = vcmp.eq.s32.totalorder %v67, %v55
  %vm84 = vcmp.eq.s32.totalorder %v70, %v55
  %vm85 = vcmp.eq.s32.totalorder %v73, %v55
  %vm86 = vcmp.eq.s32.totalorder %v76, %v55
  %vm87 = vcmp.eq.s32.totalorder %v79, %v55
  %v88 = vsel %vm80, 1, 0
  %v89 = vsel %vm81, 1, 0
  %v90 = vsel %vm82, 1, 0
  %v91 = vsel %vm83, 1, 0
  %v92 = vsel %vm84, 1, 0
  %v93 = vsel %vm85, 1, 0
  %v94 = vsel %vm86, 1, 0
  %v95 = vsel %vm87, 1, 0
  %v96 = vcvt.s32.f32 %v88
  %v97 = vcvt.s32.f32 %v89
  %v98 = vcvt.s32.f32 %v90
  %v99 = vcvt.s32.f32 %v91
  %v100 = vcvt.s32.f32 %v92
  %v101 = vcvt.s32.f32 %v93
  %v102 = vcvt.s32.f32 %v94
  %v103 = vcvt.s32.f32 %v95
  %v104 = vmul.f32 %v96, %v26
  %v105 = vmul.f32 %v97, %v27
  %v106 = vmul.f32 %v98, %v28
  %v107 = vmul.f32 %v99, %v29
  %v108 = vmul.f32 %v100, %v30
  %v109 = vmul.f32 %v101, %v31
  %v110 = vmul.f32 %v102, %v32
  %v111 = vmul.f32 %v103, %v33
  %vm112 = vcmask 39936
  %v113 = vsel %vm112, %v104, 0.0
  %114 = vadd.xlane.f32.xlu0 %v113
  %v115 = vpop.xlane.xlu0 %114
  %v116 = vsel %vm112, %v105, 0.0
  %117 = vadd.xlane.f32.xlu0 %v116
  %v118 = vpop.xlane.xlu0 %117
  %v119 = vsel %vm112, %v106, 0.0
  %120 = vadd.xlane.f32.xlu0 %v119
  %v121 = vpop.xlane.xlu0 %120
  %v122 = vsel %vm112, %v107, 0.0
  %123 = vadd.xlane.f32.xlu0 %v122
  %v124 = vpop.xlane.xlu0 %123
  %v125 = vsel %vm112, %v108, 0.0
  %126 = vadd.xlane.f32.xlu0 %v125
  %v127 = vpop.xlane.xlu0 %126
  %v128 = vsel %vm112, %v109, 0.0
  %129 = vadd.xlane.f32.xlu0 %v128
  %v130 = vpop.xlane.xlu0 %129
  %v131 = vsel %vm112, %v110, 0.0
  %132 = vadd.xlane.f32.xlu0 %v131
  %v133 = vpop.xlane.xlu0 %132
  %v134 = vsel %vm112, %v111, 0.0
  %135 = vadd.xlane.f32.xlu0 %v134
  %v136 = vpop.xlane.xlu0 %135
  %v137 = vmul.f32 %v115, %v42
  %v138 = vmul.f32 %v118, %v43
  %v139 = vmul.f32 %v121, %v44
  %v140 = vmul.f32 %v124, %v45
  %v141 = vmul.f32 %v127, %v46
  %v142 = vmul.f32 %v130, %v47
  %v143 = vmul.f32 %v133, %v48
  %v144 = vmul.f32 %v136, %v49
  %vm145 = vcmask 7168
  %v146 = vsel %vm145, %v137, 0.0
  %v147 = vsel %vm145, %v138, 0.0
  %v148 = vadd.f32 %v146, %v147
  %v149 = vsel %vm145, %v139, 0.0
  %v150 = vadd.f32 %v148, %v149
  %v151 = vsel %vm145, %v140, 0.0
  %v152 = vadd.f32 %v150, %v151
  %v153 = vsel %vm145, %v141, 0.0
  %v154 = vadd.f32 %v152, %v153
  %v155 = vsel %vm145, %v142, 0.0
  %v156 = vadd.f32 %v154, %v155
  %v157 = vsel %vm145, %v143, 0.0
  %v158 = vadd.f32 %v156, %v157
  %v159 = vsel %vm145, %v144, 0.0
  %v160 = vadd.f32 %v158, %v159
  %v162 = vlaneseq
  %v163 = vshrl.u32 %v162, 7
  %v164 = vsub.s32 0, %v163
  %v165 = vrot.slane %v50, %v164
  %v167 = vmul.f32 %v96, %v165
  %v168 = vsel %vm112, %v167, 0.0
  %169 = vadd.xlane.f32.xlu0 %v168
  %v170 = vpop.xlane.xlu0 %169
  %v171 = vmul.u32 %v34, 5
  %v172 = vmul.u32 %v35, 5
  %v173 = vmul.u32 %v36, 5
  %v174 = vmul.u32 %v37, 5
  %v175 = vmul.u32 %v38, 5
  %v176 = vmul.u32 %v39, 5
  %v177 = vmul.u32 %v40, 5
  %v178 = vadd.s32 %v171, %v35
  %v179 = vadd.s32 %v172, %v36
  %v180 = vadd.s32 %v173, %v37
  %v181 = vadd.s32 %v174, %v38
  %v182 = vadd.s32 %v175, %v39
  %v183 = vadd.s32 %v176, %v40
  %v184 = vadd.s32 %v177, %v41
  %185 = vset.pattern.permute.xlu0 0
  %186 = vperm.xlu0 %185, %v178
  %v187 = vpop.permute.xlu0 %186
  %188 = vset.pattern.permute.xlu0 0
  %189 = vperm.xlu0 %188, %v179
  %v190 = vpop.permute.xlu0 %189
  %191 = vset.pattern.permute.xlu0 0
  %192 = vperm.xlu0 %191, %v180
  %v193 = vpop.permute.xlu0 %192
  %194 = vset.pattern.permute.xlu0 0
  %195 = vperm.xlu0 %194, %v181
  %v196 = vpop.permute.xlu0 %195
  %197 = vset.pattern.permute.xlu0 0
  %198 = vperm.xlu0 %197, %v182
  %v199 = vpop.permute.xlu0 %198
  %200 = vset.pattern.permute.xlu0 0
  %201 = vperm.xlu0 %200, %v183
  %v202 = vpop.permute.xlu0 %201
  %203 = vset.pattern.permute.xlu0 0
  %204 = vperm.xlu0 %203, %v184
  %v205 = vpop.permute.xlu0 %204
  %vm206 = vcmp.eq.s32.totalorder %v187, %v55
  %vm207 = vcmp.eq.s32.totalorder %v190, %v55
  %vm208 = vcmp.eq.s32.totalorder %v193, %v55
  %vm209 = vcmp.eq.s32.totalorder %v196, %v55
  %vm210 = vcmp.eq.s32.totalorder %v199, %v55
  %vm211 = vcmp.eq.s32.totalorder %v202, %v55
  %vm212 = vcmp.eq.s32.totalorder %v205, %v55
  %v213 = vsel %vm206, 1, 0
  %v214 = vsel %vm207, 1, 0
  %v215 = vsel %vm208, 1, 0
  %v216 = vsel %vm209, 1, 0
  %v217 = vsel %vm210, 1, 0
  %v218 = vsel %vm211, 1, 0
  %v219 = vsel %vm212, 1, 0
  %v220 = vcvt.s32.f32 %v213
  %v221 = vcvt.s32.f32 %v214
  %v222 = vcvt.s32.f32 %v215
  %v223 = vcvt.s32.f32 %v216
  %v224 = vcvt.s32.f32 %v217
  %v225 = vcvt.s32.f32 %v218
  %v226 = vcvt.s32.f32 %v219
  %v228 = vlaneseq
  %v229 = vshrl.u32 %v228, 7
  %v230 = vsub.s32 0, %v229
  %v231 = vrot.slane %v53, %v230
  %v233 = vmul.f32 %v220, %v231
  %v234 = vmul.f32 %v221, %v231
  %v235 = vmul.f32 %v222, %v231
  %v236 = vmul.f32 %v223, %v231
  %v237 = vmul.f32 %v224, %v231
  %v238 = vmul.f32 %v225, %v231
  %v239 = vmul.f32 %v226, %v231
  %vm240 = vcmask 203776
  %v241 = vsel %vm240, %v233, 0.0
  %242 = vadd.xlane.f32.xlu0 %v241
  %v243 = vpop.xlane.xlu0 %242
  %v244 = vsel %vm240, %v234, 0.0
  %245 = vadd.xlane.f32.xlu0 %v244
  %v246 = vpop.xlane.xlu0 %245
  %v247 = vsel %vm240, %v235, 0.0
  %248 = vadd.xlane.f32.xlu0 %v247
  %v249 = vpop.xlane.xlu0 %248
  %v250 = vsel %vm240, %v236, 0.0
  %251 = vadd.xlane.f32.xlu0 %v250
  %v252 = vpop.xlane.xlu0 %251
  %v253 = vsel %vm240, %v237, 0.0
  %254 = vadd.xlane.f32.xlu0 %v253
  %v255 = vpop.xlane.xlu0 %254
  %v256 = vsel %vm240, %v238, 0.0
  %257 = vadd.xlane.f32.xlu0 %v256
  %v258 = vpop.xlane.xlu0 %257
  %v259 = vsel %vm240, %v239, 0.0
  %260 = vadd.xlane.f32.xlu0 %v259
  %v261 = vpop.xlane.xlu0 %260
  %v262 = vmul.f32 %v243, %v43
  %v263 = vmul.f32 %v246, %v44
  %v264 = vmul.f32 %v249, %v45
  %v265 = vmul.f32 %v252, %v46
  %v266 = vmul.f32 %v255, %v47
  %v267 = vmul.f32 %v258, %v48
  %v268 = vmul.f32 %v261, %v49
  %v269 = vsel %vm145, %v262, 0.0
  %v270 = vsel %vm145, %v263, 0.0
  %v271 = vadd.f32 %v269, %v270
  %v272 = vsel %vm145, %v264, 0.0
  %v273 = vadd.f32 %v271, %v272
  %v274 = vsel %vm145, %v265, 0.0
  %v275 = vadd.f32 %v273, %v274
  %v276 = vsel %vm145, %v266, 0.0
  %v277 = vadd.f32 %v275, %v276
  %v278 = vsel %vm145, %v267, 0.0
  %v279 = vadd.f32 %v277, %v278
  %v280 = vsel %vm145, %v268, 0.0
  %v281 = vadd.f32 %v279, %v280
  %v282 = vsel %vm145, %v42, 0.0
  %v283 = vsel %vm145, %v43, 0.0
  %v284 = vadd.f32 %v282, %v283
  %v285 = vsel %vm145, %v44, 0.0
  %v286 = vadd.f32 %v284, %v285
  %v287 = vsel %vm145, %v45, 0.0
  %v288 = vadd.f32 %v286, %v287
  %v289 = vsel %vm145, %v46, 0.0
  %v290 = vadd.f32 %v288, %v289
  %v291 = vsel %vm145, %v47, 0.0
  %v292 = vadd.f32 %v290, %v291
  %v293 = vsel %vm145, %v48, 0.0
  %v294 = vadd.f32 %v292, %v293
  %v295 = vsel %vm145, %v49, 0.0
  %v296 = vadd.f32 %v294, %v295
  %v297 = vcvt.f32.s32.to.zero.pseudo %v296
  %v298 = vsub.s32 %v297, 1
  %vm299 = vcmp.eq.s32.totalorder %v298, 0
  %vm300 = vcmp.eq.s32.totalorder %v298, 1
  %vm301 = vcmp.eq.s32.totalorder %v298, 2
  %vm302 = vcmp.eq.s32.totalorder %v298, 3
  %vm303 = vcmp.eq.s32.totalorder %v298, 4
  %vm304 = vcmp.eq.s32.totalorder %v298, 5
  %vm305 = vcmp.eq.s32.totalorder %v298, 6
  %vm306 = vcmp.eq.s32.totalorder %v298, 7
  %v307 = vsel %vm299, 1, 0
  %v308 = vsel %vm300, 1, 0
  %v309 = vsel %vm301, 1, 0
  %v310 = vsel %vm302, 1, 0
  %v311 = vsel %vm303, 1, 0
  %v312 = vsel %vm304, 1, 0
  %v313 = vsel %vm305, 1, 0
  %v314 = vsel %vm306, 1, 0
  %v315 = vcvt.s32.f32 %v307
  %v316 = vcvt.s32.f32 %v308
  %v317 = vcvt.s32.f32 %v309
  %v318 = vcvt.s32.f32 %v310
  %v319 = vcvt.s32.f32 %v311
  %v320 = vcvt.s32.f32 %v312
  %v321 = vcvt.s32.f32 %v313
  %v322 = vcvt.s32.f32 %v314
  %324 = vset.pattern.permute.xlu0 0
  %325 = vperm.xlu0 %324, %v315
  %v326 = vpop.permute.xlu0 %325
  %329 = vset.pattern.permute.xlu0 0
  %330 = vperm.xlu0 %329, %v316
  %v331 = vpop.permute.xlu0 %330
  %334 = vset.pattern.permute.xlu0 0
  %335 = vperm.xlu0 %334, %v317
  %v336 = vpop.permute.xlu0 %335
  %339 = vset.pattern.permute.xlu0 0
  %340 = vperm.xlu0 %339, %v318
  %v341 = vpop.permute.xlu0 %340
  %344 = vset.pattern.permute.xlu0 0
  %345 = vperm.xlu0 %344, %v319
  %v346 = vpop.permute.xlu0 %345
  %349 = vset.pattern.permute.xlu0 0
  %350 = vperm.xlu0 %349, %v320
  %v351 = vpop.permute.xlu0 %350
  %354 = vset.pattern.permute.xlu0 0
  %355 = vperm.xlu0 %354, %v321
  %v356 = vpop.permute.xlu0 %355
  %359 = vset.pattern.permute.xlu0 0
  %360 = vperm.xlu0 %359, %v322
  %v361 = vpop.permute.xlu0 %360
  %v363 = vmul.f32 %v326, %v96
  %v364 = vmul.f32 %v331, %v97
  %v365 = vmul.f32 %v336, %v98
  %v366 = vmul.f32 %v341, %v99
  %v367 = vmul.f32 %v346, %v100
  %v368 = vmul.f32 %v351, %v101
  %v369 = vmul.f32 %v356, %v102
  %v370 = vmul.f32 %v361, %v103
  %v371 = vsel %vm112, %v363, 0.0
  %v372 = vsel %vm112, %v364, 0.0
  %v373 = vadd.f32 %v371, %v372
  %v374 = vsel %vm112, %v365, 0.0
  %v375 = vadd.f32 %v373, %v374
  %v376 = vsel %vm112, %v366, 0.0
  %v377 = vadd.f32 %v375, %v376
  %v378 = vsel %vm112, %v367, 0.0
  %v379 = vadd.f32 %v377, %v378
  %v380 = vsel %vm112, %v368, 0.0
  %v381 = vadd.f32 %v379, %v380
  %v382 = vsel %vm112, %v369, 0.0
  %v383 = vadd.f32 %v381, %v382
  %v384 = vsel %vm112, %v370, 0.0
  %v385 = vadd.f32 %v383, %v384
  %v387 = vlaneseq
  %v388 = vshrl.u32 %v387, 7
  %v389 = vsub.s32 0, %v388
  %v390 = vrot.slane %v51, %v389
  %v392 = vmul.f32 %v385, %v390
  %v393 = vsel %vm112, %v392, 0.0
  %394 = vadd.xlane.f32.xlu0 %v393
  %v395 = vpop.xlane.xlu0 %394
  %v396 = vadd.f32 %v170, %v160
  %v397 = vadd.f32 %v396, %v281
  %v398 = vadd.f32 %v397, %v395
  %v399 = vadd.f32 %v165, %v26
  %s400 = scalar_lea.vmem %s0, 8
  %v401 = vld [vmem:[%s400] sm:$0xff]
  %s402 = scalar_lea.vmem %s2, 8
  %v403 = vld [vmem:[%s402] sm:$0xff]
  %v405 = vcombine.high %v399, %v399
  %v407 = vunpack.c.l.s4 1966171168
  %v408 = vunpack.c.0.s8 %v407
  %v409 = vlaneseq
  %v410 = vshrl.u32 %v409, 7
  %v411 = vsub.s32 %v408, %v410
  %v412 = vrot.slane %v399, %v411
  %v414 = vunpack.c.l.s4 1966171168
  %v415 = vunpack.c.0.s8 %v414
  %v416 = vlaneseq
  %v417 = vshrl.u32 %v416, 7
  %v418 = vsub.s32 %v415, %v417
  %v419 = vrot.slane %v405, %v418
  %v420 = vcombine.high %v412, %v412
  %v421 = vcombine.high %v419, %v419
  %v423 = vunpack.c.l.s4 1966171168
  %v424 = vunpack.c.0.s8 %v423
  %v425 = vlaneseq
  %v426 = vshrl.u32 %v425, 7
  %v427 = vsub.s32 %v424, %v426
  %v428 = vrot.slane %v412, %v427
  %v430 = vunpack.c.l.s4 1966171168
  %v431 = vunpack.c.0.s8 %v430
  %v432 = vlaneseq
  %v433 = vshrl.u32 %v432, 7
  %v434 = vsub.s32 %v431, %v433
  %v435 = vrot.slane %v419, %v434
  %v437 = vunpack.c.l.s4 1966171168
  %v438 = vunpack.c.0.s8 %v437
  %v439 = vlaneseq
  %v440 = vshrl.u32 %v439, 7
  %v441 = vsub.s32 %v438, %v440
  %v442 = vrot.slane %v420, %v441
  %v444 = vunpack.c.l.s4 1966171168
  %v445 = vunpack.c.0.s8 %v444
  %v446 = vlaneseq
  %v447 = vshrl.u32 %v446, 7
  %v448 = vsub.s32 %v445, %v447
  %v449 = vrot.slane %v421, %v448
  %v450 = vcombine.high %v428, %v428
  %v451 = vcombine.high %v435, %v435
  %v452 = vcombine.high %v442, %v442
  %v453 = vcombine.high %v449, %v449
  %v454 = vlaneseq
  %v455 = vshrl.u32 %v454, 7
  %v456 = vsub.s32 0, %v455
  %v457 = vrot.slane %v428, %v456
  %v458 = vlaneseq
  %v459 = vshrl.u32 %v458, 7
  %v460 = vsub.s32 0, %v459
  %v461 = vrot.slane %v442, %v460
  %v462 = vlaneseq
  %v463 = vshrl.u32 %v462, 7
  %v464 = vsub.s32 0, %v463
  %v465 = vrot.slane %v450, %v464
  %v466 = vlaneseq
  %v467 = vshrl.u32 %v466, 7
  %v468 = vsub.s32 0, %v467
  %v469 = vrot.slane %v452, %v468
  %v470 = vlaneseq
  %v471 = vshrl.u32 %v470, 7
  %v472 = vsub.s32 0, %v471
  %v473 = vrot.slane %v435, %v472
  %v474 = vlaneseq
  %v475 = vshrl.u32 %v474, 7
  %v476 = vsub.s32 0, %v475
  %v477 = vrot.slane %v449, %v476
  %v478 = vlaneseq
  %v479 = vshrl.u32 %v478, 7
  %v480 = vsub.s32 0, %v479
  %v481 = vrot.slane %v451, %v480
  %v482 = vlaneseq
  %v483 = vshrl.u32 %v482, 7
  %v484 = vsub.s32 0, %v483
  %v485 = vrot.slane %v453, %v484
  %v494 = vadd.f32 %v457, %v52
  %v495 = vadd.f32 %v461, %v52
  %v496 = vadd.f32 %v465, %v52
  %v497 = vadd.f32 %v469, %v52
  %v498 = vadd.f32 %v473, %v52
  %v499 = vadd.f32 %v477, %v52
  %v500 = vadd.f32 %v481, %v52
  %v501 = vadd.f32 %v485, %v52
  %vm502 = vcmask 36864
  %v503 = vsel %vm502, %v494, -inf
  %504 = vmax.xlane.f32.xlu0 %v503
  %v505 = vpop.xlane.xlu0 %504
  %v506 = vsel %vm502, %v495, -inf
  %507 = vmax.xlane.f32.xlu0 %v506
  %v508 = vpop.xlane.xlu0 %507
  %v509 = vsel %vm502, %v496, -inf
  %510 = vmax.xlane.f32.xlu0 %v509
  %v511 = vpop.xlane.xlu0 %510
  %v512 = vsel %vm502, %v497, -inf
  %513 = vmax.xlane.f32.xlu0 %v512
  %v514 = vpop.xlane.xlu0 %513
  %v515 = vsel %vm502, %v498, -inf
  %516 = vmax.xlane.f32.xlu0 %v515
  %v517 = vpop.xlane.xlu0 %516
  %v518 = vsel %vm502, %v499, -inf
  %519 = vmax.xlane.f32.xlu0 %v518
  %v520 = vpop.xlane.xlu0 %519
  %v521 = vsel %vm502, %v500, -inf
  %522 = vmax.xlane.f32.xlu0 %v521
  %v523 = vpop.xlane.xlu0 %522
  %v524 = vsel %vm502, %v501, -inf
  %525 = vmax.xlane.f32.xlu0 %v524
  %v526 = vpop.xlane.xlu0 %525
  %v527 = vsub.f32 %v494, %v505
  %v528 = vsub.f32 %v495, %v508
  %v529 = vsub.f32 %v496, %v511
  %v530 = vsub.f32 %v497, %v514
  %v531 = vsub.f32 %v498, %v517
  %v532 = vsub.f32 %v499, %v520
  %v533 = vsub.f32 %v500, %v523
  %v534 = vsub.f32 %v501, %v526
  %v535 = vmul.f32 %v527, 1.442695
  %v536 = vpow.pop %v535
  %v537 = vmul.f32 %v528, 1.442695
  %v538 = vpow.pop %v537
  %v539 = vmul.f32 %v529, 1.442695
  %v540 = vpow.pop %v539
  %v541 = vmul.f32 %v530, 1.442695
  %v542 = vpow.pop %v541
  %v543 = vmul.f32 %v531, 1.442695
  %v544 = vpow.pop %v543
  %v545 = vmul.f32 %v532, 1.442695
  %v546 = vpow.pop %v545
  %v547 = vmul.f32 %v533, 1.442695
  %v548 = vpow.pop %v547
  %v549 = vmul.f32 %v534, 1.442695
  %v550 = vpow.pop %v549
  %v551 = vsel %vm502, %v536, 0.0
  %552 = vadd.xlane.f32.xlu0 %v551
  %v553 = vpop.xlane.xlu0 %552
  %v554 = vsel %vm502, %v538, 0.0
  %555 = vadd.xlane.f32.xlu0 %v554
  %v556 = vpop.xlane.xlu0 %555
  %v557 = vsel %vm502, %v540, 0.0
  %558 = vadd.xlane.f32.xlu0 %v557
  %v559 = vpop.xlane.xlu0 %558
  %v560 = vsel %vm502, %v542, 0.0
  %561 = vadd.xlane.f32.xlu0 %v560
  %v562 = vpop.xlane.xlu0 %561
  %v563 = vsel %vm502, %v544, 0.0
  %564 = vadd.xlane.f32.xlu0 %v563
  %v565 = vpop.xlane.xlu0 %564
  %v566 = vsel %vm502, %v546, 0.0
  %567 = vadd.xlane.f32.xlu0 %v566
  %v568 = vpop.xlane.xlu0 %567
  %v569 = vsel %vm502, %v548, 0.0
  %570 = vadd.xlane.f32.xlu0 %v569
  %v571 = vpop.xlane.xlu0 %570
  %v572 = vsel %vm502, %v550, 0.0
  %573 = vadd.xlane.f32.xlu0 %v572
  %v574 = vpop.xlane.xlu0 %573
  %v575 = vlog2.pop %v553
  %v576 = vmul.f32 %v575, 0.6931472
  %v577 = vlog2.pop %v556
  %v578 = vmul.f32 %v577, 0.6931472
  %v579 = vlog2.pop %v559
  %v580 = vmul.f32 %v579, 0.6931472
  %v581 = vlog2.pop %v562
  %v582 = vmul.f32 %v581, 0.6931472
  %v583 = vlog2.pop %v565
  %v584 = vmul.f32 %v583, 0.6931472
  %v585 = vlog2.pop %v568
  %v586 = vmul.f32 %v585, 0.6931472
  %v587 = vlog2.pop %v571
  %v588 = vmul.f32 %v587, 0.6931472
  %v589 = vlog2.pop %v574
  %v590 = vmul.f32 %v589, 0.6931472
  %v591 = vadd.f32 %v576, %v505
  %v592 = vadd.f32 %v578, %v508
  %v593 = vadd.f32 %v580, %v511
  %v594 = vadd.f32 %v582, %v514
  %v595 = vadd.f32 %v584, %v517
  %v596 = vadd.f32 %v586, %v520
  %v597 = vadd.f32 %v588, %v523
  %v598 = vadd.f32 %v590, %v526
  %v600 = vlaneseq
  %v601 = vshrl.u32 %v600, 7
  %v602 = vsub.s32 0, %v601
  %v603 = vrot.slane %v401, %v602
  %605 = vbcast.lane.b32.xlu0 %v603, 256
  %v606 = vpop.permute.xlu0 %605
  %v607 = vlaneseq
  %v608 = vshrl.u32 %v607, 7
  %v609 = vsub.s32 1, %v608
  %v610 = vrot.slane %v401, %v609
  %612 = vbcast.lane.b32.xlu0 %v610, 256
  %v613 = vpop.permute.xlu0 %612
  %v614 = vlaneseq
  %v615 = vshrl.u32 %v614, 7
  %v616 = vsub.s32 2, %v615
  %v617 = vrot.slane %v401, %v616
  %619 = vbcast.lane.b32.xlu0 %v617, 256
  %v620 = vpop.permute.xlu0 %619
  %v621 = vlaneseq
  %v622 = vshrl.u32 %v621, 7
  %v623 = vsub.s32 3, %v622
  %v624 = vrot.slane %v401, %v623
  %626 = vbcast.lane.b32.xlu0 %v624, 256
  %v627 = vpop.permute.xlu0 %626
  %v628 = vlaneseq
  %v629 = vshrl.u32 %v628, 7
  %v630 = vsub.s32 4, %v629
  %v631 = vrot.slane %v401, %v630
  %633 = vbcast.lane.b32.xlu0 %v631, 256
  %v634 = vpop.permute.xlu0 %633
  %v635 = vlaneseq
  %v636 = vshrl.u32 %v635, 7
  %v637 = vsub.s32 5, %v636
  %v638 = vrot.slane %v401, %v637
  %640 = vbcast.lane.b32.xlu0 %v638, 256
  %v641 = vpop.permute.xlu0 %640
  %v642 = vlaneseq
  %v643 = vshrl.u32 %v642, 7
  %v644 = vsub.s32 6, %v643
  %v645 = vrot.slane %v401, %v644
  %647 = vbcast.lane.b32.xlu0 %v645, 256
  %v648 = vpop.permute.xlu0 %647
  %v649 = vlaneseq
  %v650 = vshrl.u32 %v649, 7
  %v651 = vsub.s32 7, %v650
  %v652 = vrot.slane %v401, %v651
  %654 = vbcast.lane.b32.xlu0 %v652, 256
  %v655 = vpop.permute.xlu0 %654
  %v664 = vadd.f32 %v591, %v606
  %v665 = vadd.f32 %v592, %v613
  %v666 = vadd.f32 %v593, %v620
  %v667 = vadd.f32 %v594, %v627
  %v668 = vadd.f32 %v595, %v634
  %v669 = vadd.f32 %v596, %v641
  %v670 = vadd.f32 %v597, %v648
  %v671 = vadd.f32 %v598, %v655
  %vm672 = vcmp.gt.f32.partialorder %v403, 0.0
  %v673 = vsel %vm672, 1, 0
  %674 = vset.pattern.permute.xlu0 0
  %675 = vperm.xlu0 %674, %v673
  %v676 = vpop.permute.xlu0 %675
  %vm677 = vcmp.eq.s32.totalorder %v676, 1
  %686 = vset.pattern.permute.xlu0 0
  %687 = vperm.xlu0 %686, %v664
  %v688 = vpop.permute.xlu0 %687
  %689 = vset.pattern.permute.xlu0 0
  %690 = vperm.xlu0 %689, %v665
  %v691 = vpop.permute.xlu0 %690
  %692 = vset.pattern.permute.xlu0 0
  %693 = vperm.xlu0 %692, %v666
  %v694 = vpop.permute.xlu0 %693
  %695 = vset.pattern.permute.xlu0 0
  %696 = vperm.xlu0 %695, %v667
  %v697 = vpop.permute.xlu0 %696
  %698 = vset.pattern.permute.xlu0 0
  %699 = vperm.xlu0 %698, %v668
  %v700 = vpop.permute.xlu0 %699
  %701 = vset.pattern.permute.xlu0 0
  %702 = vperm.xlu0 %701, %v669
  %v703 = vpop.permute.xlu0 %702
  %704 = vset.pattern.permute.xlu0 0
  %705 = vperm.xlu0 %704, %v670
  %v706 = vpop.permute.xlu0 %705
  %707 = vset.pattern.permute.xlu0 0
  %708 = vperm.xlu0 %707, %v671
  %v709 = vpop.permute.xlu0 %708
  %v710 = vlaneseq
  %v711 = vshrl.u32 %v710, 7
  %v712 = vsub.s32 %v55, %v711
  %v713 = vrot.slane %v688, %v712
  %v714 = vlaneseq
  %v715 = vshrl.u32 %v714, 7
  %v716 = vsub.s32 %v55, %v715
  %v717 = vrot.slane %v691, %v716
  %v718 = vlaneseq
  %v719 = vshrl.u32 %v718, 7
  %v720 = vsub.s32 %v55, %v719
  %v721 = vrot.slane %v694, %v720
  %v722 = vlaneseq
  %v723 = vshrl.u32 %v722, 7
  %v724 = vsub.s32 %v55, %v723
  %v725 = vrot.slane %v697, %v724
  %v726 = vlaneseq
  %v727 = vshrl.u32 %v726, 7
  %v728 = vsub.s32 %v55, %v727
  %v729 = vrot.slane %v700, %v728
  %v730 = vlaneseq
  %v731 = vshrl.u32 %v730, 7
  %v732 = vsub.s32 %v55, %v731
  %v733 = vrot.slane %v703, %v732
  %v734 = vlaneseq
  %v735 = vshrl.u32 %v734, 7
  %v736 = vsub.s32 %v55, %v735
  %v737 = vrot.slane %v706, %v736
  %v738 = vlaneseq
  %v739 = vshrl.u32 %v738, 7
  %v740 = vsub.s32 %v55, %v739
  %v741 = vrot.slane %v709, %v740
  %vm742 = vcmask 1041409
  %v743 = vsel %vm742, %v717, %v713
  %vm744 = vcmask 1042434
  %v745 = vsel %vm744, %v721, %v743
  %vm746 = vcmask 1043459
  %v747 = vsel %vm746, %v725, %v745
  %vm748 = vcmask 1044484
  %v749 = vsel %vm748, %v729, %v747
  %vm750 = vcmask 1045509
  %v751 = vsel %vm750, %v733, %v749
  %vm752 = vcmask 1046534
  %v753 = vsel %vm752, %v737, %v751
  %vm754 = vcmask 1047559
  %v755 = vsel %vm754, %v741, %v753
  %v757 = vsel %vm677, %v755, %v399
  %s758 = scalar_lea.vmem %s0, 16
  %v759 = vld [vmem:[%s758] sm:$0xff]
  %s760 = scalar_lea.vmem %s2, 16
  %v761 = vld [vmem:[%s760] sm:$0xff]
  %v763 = vcombine.high %v757, %v757
  %v765 = vunpack.c.l.s4 1966171168
  %v766 = vunpack.c.0.s8 %v765
  %v767 = vlaneseq
  %v768 = vshrl.u32 %v767, 7
  %v769 = vsub.s32 %v766, %v768
  %v770 = vrot.slane %v757, %v769
  %v772 = vunpack.c.l.s4 1966171168
  %v773 = vunpack.c.0.s8 %v772
  %v774 = vlaneseq
  %v775 = vshrl.u32 %v774, 7
  %v776 = vsub.s32 %v773, %v775
  %v777 = vrot.slane %v763, %v776
  %v778 = vcombine.high %v770, %v770
  %v779 = vcombine.high %v777, %v777
  %v781 = vunpack.c.l.s4 1966171168
  %v782 = vunpack.c.0.s8 %v781
  %v783 = vlaneseq
  %v784 = vshrl.u32 %v783, 7
  %v785 = vsub.s32 %v782, %v784
  %v786 = vrot.slane %v770, %v785
  %v788 = vunpack.c.l.s4 1966171168
  %v789 = vunpack.c.0.s8 %v788
  %v790 = vlaneseq
  %v791 = vshrl.u32 %v790, 7
  %v792 = vsub.s32 %v789, %v791
  %v793 = vrot.slane %v777, %v792
  %v795 = vunpack.c.l.s4 1966171168
  %v796 = vunpack.c.0.s8 %v795
  %v797 = vlaneseq
  %v798 = vshrl.u32 %v797, 7
  %v799 = vsub.s32 %v796, %v798
  %v800 = vrot.slane %v778, %v799
  %v802 = vunpack.c.l.s4 1966171168
  %v803 = vunpack.c.0.s8 %v802
  %v804 = vlaneseq
  %v805 = vshrl.u32 %v804, 7
  %v806 = vsub.s32 %v803, %v805
  %v807 = vrot.slane %v779, %v806
  %v808 = vcombine.high %v786, %v786
  %v809 = vcombine.high %v793, %v793
  %v810 = vcombine.high %v800, %v800
  %v811 = vcombine.high %v807, %v807
  %v812 = vlaneseq
  %v813 = vshrl.u32 %v812, 7
  %v814 = vsub.s32 0, %v813
  %v815 = vrot.slane %v786, %v814
  %v816 = vlaneseq
  %v817 = vshrl.u32 %v816, 7
  %v818 = vsub.s32 0, %v817
  %v819 = vrot.slane %v800, %v818
  %v820 = vlaneseq
  %v821 = vshrl.u32 %v820, 7
  %v822 = vsub.s32 0, %v821
  %v823 = vrot.slane %v808, %v822
  %v824 = vlaneseq
  %v825 = vshrl.u32 %v824, 7
  %v826 = vsub.s32 0, %v825
  %v827 = vrot.slane %v810, %v826
  %v828 = vlaneseq
  %v829 = vshrl.u32 %v828, 7
  %v830 = vsub.s32 0, %v829
  %v831 = vrot.slane %v793, %v830
  %v832 = vlaneseq
  %v833 = vshrl.u32 %v832, 7
  %v834 = vsub.s32 0, %v833
  %v835 = vrot.slane %v807, %v834
  %v836 = vlaneseq
  %v837 = vshrl.u32 %v836, 7
  %v838 = vsub.s32 0, %v837
  %v839 = vrot.slane %v809, %v838
  %v840 = vlaneseq
  %v841 = vshrl.u32 %v840, 7
  %v842 = vsub.s32 0, %v841
  %v843 = vrot.slane %v811, %v842
  %v852 = vadd.f32 %v815, %v52
  %v853 = vadd.f32 %v819, %v52
  %v854 = vadd.f32 %v823, %v52
  %v855 = vadd.f32 %v827, %v52
  %v856 = vadd.f32 %v831, %v52
  %v857 = vadd.f32 %v835, %v52
  %v858 = vadd.f32 %v839, %v52
  %v859 = vadd.f32 %v843, %v52
  %v860 = vsel %vm502, %v852, -inf
  %861 = vmax.xlane.f32.xlu0 %v860
  %v862 = vpop.xlane.xlu0 %861
  %v863 = vsel %vm502, %v853, -inf
  %864 = vmax.xlane.f32.xlu0 %v863
  %v865 = vpop.xlane.xlu0 %864
  %v866 = vsel %vm502, %v854, -inf
  %867 = vmax.xlane.f32.xlu0 %v866
  %v868 = vpop.xlane.xlu0 %867
  %v869 = vsel %vm502, %v855, -inf
  %870 = vmax.xlane.f32.xlu0 %v869
  %v871 = vpop.xlane.xlu0 %870
  %v872 = vsel %vm502, %v856, -inf
  %873 = vmax.xlane.f32.xlu0 %v872
  %v874 = vpop.xlane.xlu0 %873
  %v875 = vsel %vm502, %v857, -inf
  %876 = vmax.xlane.f32.xlu0 %v875
  %v877 = vpop.xlane.xlu0 %876
  %v878 = vsel %vm502, %v858, -inf
  %879 = vmax.xlane.f32.xlu0 %v878
  %v880 = vpop.xlane.xlu0 %879
  %v881 = vsel %vm502, %v859, -inf
  %882 = vmax.xlane.f32.xlu0 %v881
  %v883 = vpop.xlane.xlu0 %882
  %v884 = vsub.f32 %v852, %v862
  %v885 = vsub.f32 %v853, %v865
  %v886 = vsub.f32 %v854, %v868
  %v887 = vsub.f32 %v855, %v871
  %v888 = vsub.f32 %v856, %v874
  %v889 = vsub.f32 %v857, %v877
  %v890 = vsub.f32 %v858, %v880
  %v891 = vsub.f32 %v859, %v883
  %v892 = vmul.f32 %v884, 1.442695
  %v893 = vpow.pop %v892
  %v894 = vmul.f32 %v885, 1.442695
  %v895 = vpow.pop %v894
  %v896 = vmul.f32 %v886, 1.442695
  %v897 = vpow.pop %v896
  %v898 = vmul.f32 %v887, 1.442695
  %v899 = vpow.pop %v898
  %v900 = vmul.f32 %v888, 1.442695
  %v901 = vpow.pop %v900
  %v902 = vmul.f32 %v889, 1.442695
  %v903 = vpow.pop %v902
  %v904 = vmul.f32 %v890, 1.442695
  %v905 = vpow.pop %v904
  %v906 = vmul.f32 %v891, 1.442695
  %v907 = vpow.pop %v906
  %v908 = vsel %vm502, %v893, 0.0
  %909 = vadd.xlane.f32.xlu0 %v908
  %v910 = vpop.xlane.xlu0 %909
  %v911 = vsel %vm502, %v895, 0.0
  %912 = vadd.xlane.f32.xlu0 %v911
  %v913 = vpop.xlane.xlu0 %912
  %v914 = vsel %vm502, %v897, 0.0
  %915 = vadd.xlane.f32.xlu0 %v914
  %v916 = vpop.xlane.xlu0 %915
  %v917 = vsel %vm502, %v899, 0.0
  %918 = vadd.xlane.f32.xlu0 %v917
  %v919 = vpop.xlane.xlu0 %918
  %v920 = vsel %vm502, %v901, 0.0
  %921 = vadd.xlane.f32.xlu0 %v920
  %v922 = vpop.xlane.xlu0 %921
  %v923 = vsel %vm502, %v903, 0.0
  %924 = vadd.xlane.f32.xlu0 %v923
  %v925 = vpop.xlane.xlu0 %924
  %v926 = vsel %vm502, %v905, 0.0
  %927 = vadd.xlane.f32.xlu0 %v926
  %v928 = vpop.xlane.xlu0 %927
  %v929 = vsel %vm502, %v907, 0.0
  %930 = vadd.xlane.f32.xlu0 %v929
  %v931 = vpop.xlane.xlu0 %930
  %v932 = vlog2.pop %v910
  %v933 = vmul.f32 %v932, 0.6931472
  %v934 = vlog2.pop %v913
  %v935 = vmul.f32 %v934, 0.6931472
  %v936 = vlog2.pop %v916
  %v937 = vmul.f32 %v936, 0.6931472
  %v938 = vlog2.pop %v919
  %v939 = vmul.f32 %v938, 0.6931472
  %v940 = vlog2.pop %v922
  %v941 = vmul.f32 %v940, 0.6931472
  %v942 = vlog2.pop %v925
  %v943 = vmul.f32 %v942, 0.6931472
  %v944 = vlog2.pop %v928
  %v945 = vmul.f32 %v944, 0.6931472
  %v946 = vlog2.pop %v931
  %v947 = vmul.f32 %v946, 0.6931472
  %v948 = vadd.f32 %v933, %v862
  %v949 = vadd.f32 %v935, %v865
  %v950 = vadd.f32 %v937, %v868
  %v951 = vadd.f32 %v939, %v871
  %v952 = vadd.f32 %v941, %v874
  %v953 = vadd.f32 %v943, %v877
  %v954 = vadd.f32 %v945, %v880
  %v955 = vadd.f32 %v947, %v883
  %v957 = vlaneseq
  %v958 = vshrl.u32 %v957, 7
  %v959 = vsub.s32 0, %v958
  %v960 = vrot.slane %v759, %v959
  %962 = vbcast.lane.b32.xlu0 %v960, 256
  %v963 = vpop.permute.xlu0 %962
  %v964 = vlaneseq
  %v965 = vshrl.u32 %v964, 7
  %v966 = vsub.s32 1, %v965
  %v967 = vrot.slane %v759, %v966
  %969 = vbcast.lane.b32.xlu0 %v967, 256
  %v970 = vpop.permute.xlu0 %969
  %v971 = vlaneseq
  %v972 = vshrl.u32 %v971, 7
  %v973 = vsub.s32 2, %v972
  %v974 = vrot.slane %v759, %v973
  %976 = vbcast.lane.b32.xlu0 %v974, 256
  %v977 = vpop.permute.xlu0 %976
  %v978 = vlaneseq
  %v979 = vshrl.u32 %v978, 7
  %v980 = vsub.s32 3, %v979
  %v981 = vrot.slane %v759, %v980
  %983 = vbcast.lane.b32.xlu0 %v981, 256
  %v984 = vpop.permute.xlu0 %983
  %v985 = vlaneseq
  %v986 = vshrl.u32 %v985, 7
  %v987 = vsub.s32 4, %v986
  %v988 = vrot.slane %v759, %v987
  %990 = vbcast.lane.b32.xlu0 %v988, 256
  %v991 = vpop.permute.xlu0 %990
  %v992 = vlaneseq
  %v993 = vshrl.u32 %v992, 7
  %v994 = vsub.s32 5, %v993
  %v995 = vrot.slane %v759, %v994
  %997 = vbcast.lane.b32.xlu0 %v995, 256
  %v998 = vpop.permute.xlu0 %997
  %v999 = vlaneseq
  %v1000 = vshrl.u32 %v999, 7
  %v1001 = vsub.s32 6, %v1000
  %v1002 = vrot.slane %v759, %v1001
  %1004 = vbcast.lane.b32.xlu0 %v1002, 256
  %v1005 = vpop.permute.xlu0 %1004
  %v1006 = vlaneseq
  %v1007 = vshrl.u32 %v1006, 7
  %v1008 = vsub.s32 7, %v1007
  %v1009 = vrot.slane %v759, %v1008
  %1011 = vbcast.lane.b32.xlu0 %v1009, 256
  %v1012 = vpop.permute.xlu0 %1011
  %v1021 = vadd.f32 %v948, %v963
  %v1022 = vadd.f32 %v949, %v970
  %v1023 = vadd.f32 %v950, %v977
  %v1024 = vadd.f32 %v951, %v984
  %v1025 = vadd.f32 %v952, %v991
  %v1026 = vadd.f32 %v953, %v998
  %v1027 = vadd.f32 %v954, %v1005
  %v1028 = vadd.f32 %v955, %v1012
  %vm1029 = vcmp.gt.f32.partialorder %v761, 0.0
  %v1030 = vsel %vm1029, 1, 0
  %1031 = vset.pattern.permute.xlu0 0
  %1032 = vperm.xlu0 %1031, %v1030
  %v1033 = vpop.permute.xlu0 %1032
  %vm1034 = vcmp.eq.s32.totalorder %v1033, 1
  %1043 = vset.pattern.permute.xlu0 0
  %1044 = vperm.xlu0 %1043, %v1021
  %v1045 = vpop.permute.xlu0 %1044
  %1046 = vset.pattern.permute.xlu0 0
  %1047 = vperm.xlu0 %1046, %v1022
  %v1048 = vpop.permute.xlu0 %1047
  %1049 = vset.pattern.permute.xlu0 0
  %1050 = vperm.xlu0 %1049, %v1023
  %v1051 = vpop.permute.xlu0 %1050
  %1052 = vset.pattern.permute.xlu0 0
  %1053 = vperm.xlu0 %1052, %v1024
  %v1054 = vpop.permute.xlu0 %1053
  %1055 = vset.pattern.permute.xlu0 0
  %1056 = vperm.xlu0 %1055, %v1025
  %v1057 = vpop.permute.xlu0 %1056
  %1058 = vset.pattern.permute.xlu0 0
  %1059 = vperm.xlu0 %1058, %v1026
  %v1060 = vpop.permute.xlu0 %1059
  %1061 = vset.pattern.permute.xlu0 0
  %1062 = vperm.xlu0 %1061, %v1027
  %v1063 = vpop.permute.xlu0 %1062
  %1064 = vset.pattern.permute.xlu0 0
  %1065 = vperm.xlu0 %1064, %v1028
  %v1066 = vpop.permute.xlu0 %1065
  %v1067 = vlaneseq
  %v1068 = vshrl.u32 %v1067, 7
  %v1069 = vsub.s32 %v55, %v1068
  %v1070 = vrot.slane %v1045, %v1069
  %v1071 = vlaneseq
  %v1072 = vshrl.u32 %v1071, 7
  %v1073 = vsub.s32 %v55, %v1072
  %v1074 = vrot.slane %v1048, %v1073
  %v1075 = vlaneseq
  %v1076 = vshrl.u32 %v1075, 7
  %v1077 = vsub.s32 %v55, %v1076
  %v1078 = vrot.slane %v1051, %v1077
  %v1079 = vlaneseq
  %v1080 = vshrl.u32 %v1079, 7
  %v1081 = vsub.s32 %v55, %v1080
  %v1082 = vrot.slane %v1054, %v1081
  %v1083 = vlaneseq
  %v1084 = vshrl.u32 %v1083, 7
  %v1085 = vsub.s32 %v55, %v1084
  %v1086 = vrot.slane %v1057, %v1085
  %v1087 = vlaneseq
  %v1088 = vshrl.u32 %v1087, 7
  %v1089 = vsub.s32 %v55, %v1088
  %v1090 = vrot.slane %v1060, %v1089
  %v1091 = vlaneseq
  %v1092 = vshrl.u32 %v1091, 7
  %v1093 = vsub.s32 %v55, %v1092
  %v1094 = vrot.slane %v1063, %v1093
  %v1095 = vlaneseq
  %v1096 = vshrl.u32 %v1095, 7
  %v1097 = vsub.s32 %v55, %v1096
  %v1098 = vrot.slane %v1066, %v1097
  %v1099 = vsel %vm742, %v1074, %v1070
  %v1100 = vsel %vm744, %v1078, %v1099
  %v1101 = vsel %vm746, %v1082, %v1100
  %v1102 = vsel %vm748, %v1086, %v1101
  %v1103 = vsel %vm750, %v1090, %v1102
  %v1104 = vsel %vm752, %v1094, %v1103
  %v1105 = vsel %vm754, %v1098, %v1104
  %v1107 = vsel %vm1034, %v1105, %v757
  %s1108 = scalar_lea.vmem %s0, 24
  %v1109 = vld [vmem:[%s1108] sm:$0xff]
  %s1110 = scalar_lea.vmem %s2, 24
  %v1111 = vld [vmem:[%s1110] sm:$0xff]
  %v1113 = vcombine.high %v1107, %v1107
  %v1115 = vunpack.c.l.s4 1966171168
  %v1116 = vunpack.c.0.s8 %v1115
  %v1117 = vlaneseq
  %v1118 = vshrl.u32 %v1117, 7
  %v1119 = vsub.s32 %v1116, %v1118
  %v1120 = vrot.slane %v1107, %v1119
  %v1122 = vunpack.c.l.s4 1966171168
  %v1123 = vunpack.c.0.s8 %v1122
  %v1124 = vlaneseq
  %v1125 = vshrl.u32 %v1124, 7
  %v1126 = vsub.s32 %v1123, %v1125
  %v1127 = vrot.slane %v1113, %v1126
  %v1128 = vcombine.high %v1120, %v1120
  %v1129 = vcombine.high %v1127, %v1127
  %v1131 = vunpack.c.l.s4 1966171168
  %v1132 = vunpack.c.0.s8 %v1131
  %v1133 = vlaneseq
  %v1134 = vshrl.u32 %v1133, 7
  %v1135 = vsub.s32 %v1132, %v1134
  %v1136 = vrot.slane %v1120, %v1135
  %v1138 = vunpack.c.l.s4 1966171168
  %v1139 = vunpack.c.0.s8 %v1138
  %v1140 = vlaneseq
  %v1141 = vshrl.u32 %v1140, 7
  %v1142 = vsub.s32 %v1139, %v1141
  %v1143 = vrot.slane %v1127, %v1142
  %v1145 = vunpack.c.l.s4 1966171168
  %v1146 = vunpack.c.0.s8 %v1145
  %v1147 = vlaneseq
  %v1148 = vshrl.u32 %v1147, 7
  %v1149 = vsub.s32 %v1146, %v1148
  %v1150 = vrot.slane %v1128, %v1149
  %v1152 = vunpack.c.l.s4 1966171168
  %v1153 = vunpack.c.0.s8 %v1152
  %v1154 = vlaneseq
  %v1155 = vshrl.u32 %v1154, 7
  %v1156 = vsub.s32 %v1153, %v1155
  %v1157 = vrot.slane %v1129, %v1156
  %v1158 = vcombine.high %v1136, %v1136
  %v1159 = vcombine.high %v1143, %v1143
  %v1160 = vcombine.high %v1150, %v1150
  %v1161 = vcombine.high %v1157, %v1157
  %v1162 = vlaneseq
  %v1163 = vshrl.u32 %v1162, 7
  %v1164 = vsub.s32 0, %v1163
  %v1165 = vrot.slane %v1136, %v1164
  %v1166 = vlaneseq
  %v1167 = vshrl.u32 %v1166, 7
  %v1168 = vsub.s32 0, %v1167
  %v1169 = vrot.slane %v1150, %v1168
  %v1170 = vlaneseq
  %v1171 = vshrl.u32 %v1170, 7
  %v1172 = vsub.s32 0, %v1171
  %v1173 = vrot.slane %v1158, %v1172
  %v1174 = vlaneseq
  %v1175 = vshrl.u32 %v1174, 7
  %v1176 = vsub.s32 0, %v1175
  %v1177 = vrot.slane %v1160, %v1176
  %v1178 = vlaneseq
  %v1179 = vshrl.u32 %v1178, 7
  %v1180 = vsub.s32 0, %v1179
  %v1181 = vrot.slane %v1143, %v1180
  %v1182 = vlaneseq
  %v1183 = vshrl.u32 %v1182, 7
  %v1184 = vsub.s32 0, %v1183
  %v1185 = vrot.slane %v1157, %v1184
  %v1186 = vlaneseq
  %v1187 = vshrl.u32 %v1186, 7
  %v1188 = vsub.s32 0, %v1187
  %v1189 = vrot.slane %v1159, %v1188
  %v1190 = vlaneseq
  %v1191 = vshrl.u32 %v1190, 7
  %v1192 = vsub.s32 0, %v1191
  %v1193 = vrot.slane %v1161, %v1192
  %v1202 = vadd.f32 %v1165, %v52
  %v1203 = vadd.f32 %v1169, %v52
  %v1204 = vadd.f32 %v1173, %v52
  %v1205 = vadd.f32 %v1177, %v52
  %v1206 = vadd.f32 %v1181, %v52
  %v1207 = vadd.f32 %v1185, %v52
  %v1208 = vadd.f32 %v1189, %v52
  %v1209 = vadd.f32 %v1193, %v52
  %v1210 = vsel %vm502, %v1202, -inf
  %1211 = vmax.xlane.f32.xlu0 %v1210
  %v1212 = vpop.xlane.xlu0 %1211
  %v1213 = vsel %vm502, %v1203, -inf
  %1214 = vmax.xlane.f32.xlu0 %v1213
  %v1215 = vpop.xlane.xlu0 %1214
  %v1216 = vsel %vm502, %v1204, -inf
  %1217 = vmax.xlane.f32.xlu0 %v1216
  %v1218 = vpop.xlane.xlu0 %1217
  %v1219 = vsel %vm502, %v1205, -inf
  %1220 = vmax.xlane.f32.xlu0 %v1219
  %v1221 = vpop.xlane.xlu0 %1220
  %v1222 = vsel %vm502, %v1206, -inf
  %1223 = vmax.xlane.f32.xlu0 %v1222
  %v1224 = vpop.xlane.xlu0 %1223
  %v1225 = vsel %vm502, %v1207, -inf
  %1226 = vmax.xlane.f32.xlu0 %v1225
  %v1227 = vpop.xlane.xlu0 %1226
  %v1228 = vsel %vm502, %v1208, -inf
  %1229 = vmax.xlane.f32.xlu0 %v1228
  %v1230 = vpop.xlane.xlu0 %1229
  %v1231 = vsel %vm502, %v1209, -inf
  %1232 = vmax.xlane.f32.xlu0 %v1231
  %v1233 = vpop.xlane.xlu0 %1232
  %v1234 = vsub.f32 %v1202, %v1212
  %v1235 = vsub.f32 %v1203, %v1215
  %v1236 = vsub.f32 %v1204, %v1218
  %v1237 = vsub.f32 %v1205, %v1221
  %v1238 = vsub.f32 %v1206, %v1224
  %v1239 = vsub.f32 %v1207, %v1227
  %v1240 = vsub.f32 %v1208, %v1230
  %v1241 = vsub.f32 %v1209, %v1233
  %v1242 = vmul.f32 %v1234, 1.442695
  %v1243 = vpow.pop %v1242
  %v1244 = vmul.f32 %v1235, 1.442695
  %v1245 = vpow.pop %v1244
  %v1246 = vmul.f32 %v1236, 1.442695
  %v1247 = vpow.pop %v1246
  %v1248 = vmul.f32 %v1237, 1.442695
  %v1249 = vpow.pop %v1248
  %v1250 = vmul.f32 %v1238, 1.442695
  %v1251 = vpow.pop %v1250
  %v1252 = vmul.f32 %v1239, 1.442695
  %v1253 = vpow.pop %v1252
  %v1254 = vmul.f32 %v1240, 1.442695
  %v1255 = vpow.pop %v1254
  %v1256 = vmul.f32 %v1241, 1.442695
  %v1257 = vpow.pop %v1256
  %v1258 = vsel %vm502, %v1243, 0.0
  %1259 = vadd.xlane.f32.xlu0 %v1258
  %v1260 = vpop.xlane.xlu0 %1259
  %v1261 = vsel %vm502, %v1245, 0.0
  %1262 = vadd.xlane.f32.xlu0 %v1261
  %v1263 = vpop.xlane.xlu0 %1262
  %v1264 = vsel %vm502, %v1247, 0.0
  %1265 = vadd.xlane.f32.xlu0 %v1264
  %v1266 = vpop.xlane.xlu0 %1265
  %v1267 = vsel %vm502, %v1249, 0.0
  %1268 = vadd.xlane.f32.xlu0 %v1267
  %v1269 = vpop.xlane.xlu0 %1268
  %v1270 = vsel %vm502, %v1251, 0.0
  %1271 = vadd.xlane.f32.xlu0 %v1270
  %v1272 = vpop.xlane.xlu0 %1271
  %v1273 = vsel %vm502, %v1253, 0.0
  %1274 = vadd.xlane.f32.xlu0 %v1273
  %v1275 = vpop.xlane.xlu0 %1274
  %v1276 = vsel %vm502, %v1255, 0.0
  %1277 = vadd.xlane.f32.xlu0 %v1276
  %v1278 = vpop.xlane.xlu0 %1277
  %v1279 = vsel %vm502, %v1257, 0.0
  %1280 = vadd.xlane.f32.xlu0 %v1279
  %v1281 = vpop.xlane.xlu0 %1280
  %v1282 = vlog2.pop %v1260
  %v1283 = vmul.f32 %v1282, 0.6931472
  %v1284 = vlog2.pop %v1263
  %v1285 = vmul.f32 %v1284, 0.6931472
  %v1286 = vlog2.pop %v1266
  %v1287 = vmul.f32 %v1286, 0.6931472
  %v1288 = vlog2.pop %v1269
  %v1289 = vmul.f32 %v1288, 0.6931472
  %v1290 = vlog2.pop %v1272
  %v1291 = vmul.f32 %v1290, 0.6931472
  %v1292 = vlog2.pop %v1275
  %v1293 = vmul.f32 %v1292, 0.6931472
  %v1294 = vlog2.pop %v1278
  %v1295 = vmul.f32 %v1294, 0.6931472
  %v1296 = vlog2.pop %v1281
  %v1297 = vmul.f32 %v1296, 0.6931472
  %v1298 = vadd.f32 %v1283, %v1212
  %v1299 = vadd.f32 %v1285, %v1215
  %v1300 = vadd.f32 %v1287, %v1218
  %v1301 = vadd.f32 %v1289, %v1221
  %v1302 = vadd.f32 %v1291, %v1224
  %v1303 = vadd.f32 %v1293, %v1227
  %v1304 = vadd.f32 %v1295, %v1230
  %v1305 = vadd.f32 %v1297, %v1233
  %v1307 = vlaneseq
  %v1308 = vshrl.u32 %v1307, 7
  %v1309 = vsub.s32 0, %v1308
  %v1310 = vrot.slane %v1109, %v1309
  %1312 = vbcast.lane.b32.xlu0 %v1310, 256
  %v1313 = vpop.permute.xlu0 %1312
  %v1314 = vlaneseq
  %v1315 = vshrl.u32 %v1314, 7
  %v1316 = vsub.s32 1, %v1315
  %v1317 = vrot.slane %v1109, %v1316
  %1319 = vbcast.lane.b32.xlu0 %v1317, 256
  %v1320 = vpop.permute.xlu0 %1319
  %v1321 = vlaneseq
  %v1322 = vshrl.u32 %v1321, 7
  %v1323 = vsub.s32 2, %v1322
  %v1324 = vrot.slane %v1109, %v1323
  %1326 = vbcast.lane.b32.xlu0 %v1324, 256
  %v1327 = vpop.permute.xlu0 %1326
  %v1328 = vlaneseq
  %v1329 = vshrl.u32 %v1328, 7
  %v1330 = vsub.s32 3, %v1329
  %v1331 = vrot.slane %v1109, %v1330
  %1333 = vbcast.lane.b32.xlu0 %v1331, 256
  %v1334 = vpop.permute.xlu0 %1333
  %v1335 = vlaneseq
  %v1336 = vshrl.u32 %v1335, 7
  %v1337 = vsub.s32 4, %v1336
  %v1338 = vrot.slane %v1109, %v1337
  %1340 = vbcast.lane.b32.xlu0 %v1338, 256
  %v1341 = vpop.permute.xlu0 %1340
  %v1342 = vlaneseq
  %v1343 = vshrl.u32 %v1342, 7
  %v1344 = vsub.s32 5, %v1343
  %v1345 = vrot.slane %v1109, %v1344
  %1347 = vbcast.lane.b32.xlu0 %v1345, 256
  %v1348 = vpop.permute.xlu0 %1347
  %v1349 = vlaneseq
  %v1350 = vshrl.u32 %v1349, 7
  %v1351 = vsub.s32 6, %v1350
  %v1352 = vrot.slane %v1109, %v1351
  %1354 = vbcast.lane.b32.xlu0 %v1352, 256
  %v1355 = vpop.permute.xlu0 %1354
  %v1356 = vlaneseq
  %v1357 = vshrl.u32 %v1356, 7
  %v1358 = vsub.s32 7, %v1357
  %v1359 = vrot.slane %v1109, %v1358
  %1361 = vbcast.lane.b32.xlu0 %v1359, 256
  %v1362 = vpop.permute.xlu0 %1361
  %v1371 = vadd.f32 %v1298, %v1313
  %v1372 = vadd.f32 %v1299, %v1320
  %v1373 = vadd.f32 %v1300, %v1327
  %v1374 = vadd.f32 %v1301, %v1334
  %v1375 = vadd.f32 %v1302, %v1341
  %v1376 = vadd.f32 %v1303, %v1348
  %v1377 = vadd.f32 %v1304, %v1355
  %v1378 = vadd.f32 %v1305, %v1362
  %vm1379 = vcmp.gt.f32.partialorder %v1111, 0.0
  %v1380 = vsel %vm1379, 1, 0
  %1381 = vset.pattern.permute.xlu0 0
  %1382 = vperm.xlu0 %1381, %v1380
  %v1383 = vpop.permute.xlu0 %1382
  %vm1384 = vcmp.eq.s32.totalorder %v1383, 1
  %1393 = vset.pattern.permute.xlu0 0
  %1394 = vperm.xlu0 %1393, %v1371
  %v1395 = vpop.permute.xlu0 %1394
  %1396 = vset.pattern.permute.xlu0 0
  %1397 = vperm.xlu0 %1396, %v1372
  %v1398 = vpop.permute.xlu0 %1397
  %1399 = vset.pattern.permute.xlu0 0
  %1400 = vperm.xlu0 %1399, %v1373
  %v1401 = vpop.permute.xlu0 %1400
  %1402 = vset.pattern.permute.xlu0 0
  %1403 = vperm.xlu0 %1402, %v1374
  %v1404 = vpop.permute.xlu0 %1403
  %1405 = vset.pattern.permute.xlu0 0
  %1406 = vperm.xlu0 %1405, %v1375
  %v1407 = vpop.permute.xlu0 %1406
  %1408 = vset.pattern.permute.xlu0 0
  %1409 = vperm.xlu0 %1408, %v1376
  %v1410 = vpop.permute.xlu0 %1409
  %1411 = vset.pattern.permute.xlu0 0
  %1412 = vperm.xlu0 %1411, %v1377
  %v1413 = vpop.permute.xlu0 %1412
  %1414 = vset.pattern.permute.xlu0 0
  %1415 = vperm.xlu0 %1414, %v1378
  %v1416 = vpop.permute.xlu0 %1415
  %v1417 = vlaneseq
  %v1418 = vshrl.u32 %v1417, 7
  %v1419 = vsub.s32 %v55, %v1418
  %v1420 = vrot.slane %v1395, %v1419
  %v1421 = vlaneseq
  %v1422 = vshrl.u32 %v1421, 7
  %v1423 = vsub.s32 %v55, %v1422
  %v1424 = vrot.slane %v1398, %v1423
  %v1425 = vlaneseq
  %v1426 = vshrl.u32 %v1425, 7
  %v1427 = vsub.s32 %v55, %v1426
  %v1428 = vrot.slane %v1401, %v1427
  %v1429 = vlaneseq
  %v1430 = vshrl.u32 %v1429, 7
  %v1431 = vsub.s32 %v55, %v1430
  %v1432 = vrot.slane %v1404, %v1431
  %v1433 = vlaneseq
  %v1434 = vshrl.u32 %v1433, 7
  %v1435 = vsub.s32 %v55, %v1434
  %v1436 = vrot.slane %v1407, %v1435
  %v1437 = vlaneseq
  %v1438 = vshrl.u32 %v1437, 7
  %v1439 = vsub.s32 %v55, %v1438
  %v1440 = vrot.slane %v1410, %v1439
  %v1441 = vlaneseq
  %v1442 = vshrl.u32 %v1441, 7
  %v1443 = vsub.s32 %v55, %v1442
  %v1444 = vrot.slane %v1413, %v1443
  %v1445 = vlaneseq
  %v1446 = vshrl.u32 %v1445, 7
  %v1447 = vsub.s32 %v55, %v1446
  %v1448 = vrot.slane %v1416, %v1447
  %v1449 = vsel %vm742, %v1424, %v1420
  %v1450 = vsel %vm744, %v1428, %v1449
  %v1451 = vsel %vm746, %v1432, %v1450
  %v1452 = vsel %vm748, %v1436, %v1451
  %v1453 = vsel %vm750, %v1440, %v1452
  %v1454 = vsel %vm752, %v1444, %v1453
  %v1455 = vsel %vm754, %v1448, %v1454
  %v1457 = vsel %vm1384, %v1455, %v1107
  %s1458 = scalar_lea.vmem %s0, 32
  %v1459 = vld [vmem:[%s1458] sm:$0xff]
  %s1460 = scalar_lea.vmem %s2, 32
  %v1461 = vld [vmem:[%s1460] sm:$0xff]
  %v1463 = vcombine.high %v1457, %v1457
  %v1465 = vunpack.c.l.s4 1966171168
  %v1466 = vunpack.c.0.s8 %v1465
  %v1467 = vlaneseq
  %v1468 = vshrl.u32 %v1467, 7
  %v1469 = vsub.s32 %v1466, %v1468
  %v1470 = vrot.slane %v1457, %v1469
  %v1472 = vunpack.c.l.s4 1966171168
  %v1473 = vunpack.c.0.s8 %v1472
  %v1474 = vlaneseq
  %v1475 = vshrl.u32 %v1474, 7
  %v1476 = vsub.s32 %v1473, %v1475
  %v1477 = vrot.slane %v1463, %v1476
  %v1478 = vcombine.high %v1470, %v1470
  %v1479 = vcombine.high %v1477, %v1477
  %v1481 = vunpack.c.l.s4 1966171168
  %v1482 = vunpack.c.0.s8 %v1481
  %v1483 = vlaneseq
  %v1484 = vshrl.u32 %v1483, 7
  %v1485 = vsub.s32 %v1482, %v1484
  %v1486 = vrot.slane %v1470, %v1485
  %v1488 = vunpack.c.l.s4 1966171168
  %v1489 = vunpack.c.0.s8 %v1488
  %v1490 = vlaneseq
  %v1491 = vshrl.u32 %v1490, 7
  %v1492 = vsub.s32 %v1489, %v1491
  %v1493 = vrot.slane %v1477, %v1492
  %v1495 = vunpack.c.l.s4 1966171168
  %v1496 = vunpack.c.0.s8 %v1495
  %v1497 = vlaneseq
  %v1498 = vshrl.u32 %v1497, 7
  %v1499 = vsub.s32 %v1496, %v1498
  %v1500 = vrot.slane %v1478, %v1499
  %v1502 = vunpack.c.l.s4 1966171168
  %v1503 = vunpack.c.0.s8 %v1502
  %v1504 = vlaneseq
  %v1505 = vshrl.u32 %v1504, 7
  %v1506 = vsub.s32 %v1503, %v1505
  %v1507 = vrot.slane %v1479, %v1506
  %v1508 = vcombine.high %v1486, %v1486
  %v1509 = vcombine.high %v1493, %v1493
  %v1510 = vcombine.high %v1500, %v1500
  %v1511 = vcombine.high %v1507, %v1507
  %v1512 = vlaneseq
  %v1513 = vshrl.u32 %v1512, 7
  %v1514 = vsub.s32 0, %v1513
  %v1515 = vrot.slane %v1486, %v1514
  %v1516 = vlaneseq
  %v1517 = vshrl.u32 %v1516, 7
  %v1518 = vsub.s32 0, %v1517
  %v1519 = vrot.slane %v1500, %v1518
  %v1520 = vlaneseq
  %v1521 = vshrl.u32 %v1520, 7
  %v1522 = vsub.s32 0, %v1521
  %v1523 = vrot.slane %v1508, %v1522
  %v1524 = vlaneseq
  %v1525 = vshrl.u32 %v1524, 7
  %v1526 = vsub.s32 0, %v1525
  %v1527 = vrot.slane %v1510, %v1526
  %v1528 = vlaneseq
  %v1529 = vshrl.u32 %v1528, 7
  %v1530 = vsub.s32 0, %v1529
  %v1531 = vrot.slane %v1493, %v1530
  %v1532 = vlaneseq
  %v1533 = vshrl.u32 %v1532, 7
  %v1534 = vsub.s32 0, %v1533
  %v1535 = vrot.slane %v1507, %v1534
  %v1536 = vlaneseq
  %v1537 = vshrl.u32 %v1536, 7
  %v1538 = vsub.s32 0, %v1537
  %v1539 = vrot.slane %v1509, %v1538
  %v1540 = vlaneseq
  %v1541 = vshrl.u32 %v1540, 7
  %v1542 = vsub.s32 0, %v1541
  %v1543 = vrot.slane %v1511, %v1542
  %v1552 = vadd.f32 %v1515, %v52
  %v1553 = vadd.f32 %v1519, %v52
  %v1554 = vadd.f32 %v1523, %v52
  %v1555 = vadd.f32 %v1527, %v52
  %v1556 = vadd.f32 %v1531, %v52
  %v1557 = vadd.f32 %v1535, %v52
  %v1558 = vadd.f32 %v1539, %v52
  %v1559 = vadd.f32 %v1543, %v52
  %v1560 = vsel %vm502, %v1552, -inf
  %1561 = vmax.xlane.f32.xlu0 %v1560
  %v1562 = vpop.xlane.xlu0 %1561
  %v1563 = vsel %vm502, %v1553, -inf
  %1564 = vmax.xlane.f32.xlu0 %v1563
  %v1565 = vpop.xlane.xlu0 %1564
  %v1566 = vsel %vm502, %v1554, -inf
  %1567 = vmax.xlane.f32.xlu0 %v1566
  %v1568 = vpop.xlane.xlu0 %1567
  %v1569 = vsel %vm502, %v1555, -inf
  %1570 = vmax.xlane.f32.xlu0 %v1569
  %v1571 = vpop.xlane.xlu0 %1570
  %v1572 = vsel %vm502, %v1556, -inf
  %1573 = vmax.xlane.f32.xlu0 %v1572
  %v1574 = vpop.xlane.xlu0 %1573
  %v1575 = vsel %vm502, %v1557, -inf
  %1576 = vmax.xlane.f32.xlu0 %v1575
  %v1577 = vpop.xlane.xlu0 %1576
  %v1578 = vsel %vm502, %v1558, -inf
  %1579 = vmax.xlane.f32.xlu0 %v1578
  %v1580 = vpop.xlane.xlu0 %1579
  %v1581 = vsel %vm502, %v1559, -inf
  %1582 = vmax.xlane.f32.xlu0 %v1581
  %v1583 = vpop.xlane.xlu0 %1582
  %v1584 = vsub.f32 %v1552, %v1562
  %v1585 = vsub.f32 %v1553, %v1565
  %v1586 = vsub.f32 %v1554, %v1568
  %v1587 = vsub.f32 %v1555, %v1571
  %v1588 = vsub.f32 %v1556, %v1574
  %v1589 = vsub.f32 %v1557, %v1577
  %v1590 = vsub.f32 %v1558, %v1580
  %v1591 = vsub.f32 %v1559, %v1583
  %v1592 = vmul.f32 %v1584, 1.442695
  %v1593 = vpow.pop %v1592
  %v1594 = vmul.f32 %v1585, 1.442695
  %v1595 = vpow.pop %v1594
  %v1596 = vmul.f32 %v1586, 1.442695
  %v1597 = vpow.pop %v1596
  %v1598 = vmul.f32 %v1587, 1.442695
  %v1599 = vpow.pop %v1598
  %v1600 = vmul.f32 %v1588, 1.442695
  %v1601 = vpow.pop %v1600
  %v1602 = vmul.f32 %v1589, 1.442695
  %v1603 = vpow.pop %v1602
  %v1604 = vmul.f32 %v1590, 1.442695
  %v1605 = vpow.pop %v1604
  %v1606 = vmul.f32 %v1591, 1.442695
  %v1607 = vpow.pop %v1606
  %v1608 = vsel %vm502, %v1593, 0.0
  %1609 = vadd.xlane.f32.xlu0 %v1608
  %v1610 = vpop.xlane.xlu0 %1609
  %v1611 = vsel %vm502, %v1595, 0.0
  %1612 = vadd.xlane.f32.xlu0 %v1611
  %v1613 = vpop.xlane.xlu0 %1612
  %v1614 = vsel %vm502, %v1597, 0.0
  %1615 = vadd.xlane.f32.xlu0 %v1614
  %v1616 = vpop.xlane.xlu0 %1615
  %v1617 = vsel %vm502, %v1599, 0.0
  %1618 = vadd.xlane.f32.xlu0 %v1617
  %v1619 = vpop.xlane.xlu0 %1618
  %v1620 = vsel %vm502, %v1601, 0.0
  %1621 = vadd.xlane.f32.xlu0 %v1620
  %v1622 = vpop.xlane.xlu0 %1621
  %v1623 = vsel %vm502, %v1603, 0.0
  %1624 = vadd.xlane.f32.xlu0 %v1623
  %v1625 = vpop.xlane.xlu0 %1624
  %v1626 = vsel %vm502, %v1605, 0.0
  %1627 = vadd.xlane.f32.xlu0 %v1626
  %v1628 = vpop.xlane.xlu0 %1627
  %v1629 = vsel %vm502, %v1607, 0.0
  %1630 = vadd.xlane.f32.xlu0 %v1629
  %v1631 = vpop.xlane.xlu0 %1630
  %v1632 = vlog2.pop %v1610
  %v1633 = vmul.f32 %v1632, 0.6931472
  %v1634 = vlog2.pop %v1613
  %v1635 = vmul.f32 %v1634, 0.6931472
  %v1636 = vlog2.pop %v1616
  %v1637 = vmul.f32 %v1636, 0.6931472
  %v1638 = vlog2.pop %v1619
  %v1639 = vmul.f32 %v1638, 0.6931472
  %v1640 = vlog2.pop %v1622
  %v1641 = vmul.f32 %v1640, 0.6931472
  %v1642 = vlog2.pop %v1625
  %v1643 = vmul.f32 %v1642, 0.6931472
  %v1644 = vlog2.pop %v1628
  %v1645 = vmul.f32 %v1644, 0.6931472
  %v1646 = vlog2.pop %v1631
  %v1647 = vmul.f32 %v1646, 0.6931472
  %v1648 = vadd.f32 %v1633, %v1562
  %v1649 = vadd.f32 %v1635, %v1565
  %v1650 = vadd.f32 %v1637, %v1568
  %v1651 = vadd.f32 %v1639, %v1571
  %v1652 = vadd.f32 %v1641, %v1574
  %v1653 = vadd.f32 %v1643, %v1577
  %v1654 = vadd.f32 %v1645, %v1580
  %v1655 = vadd.f32 %v1647, %v1583
  %v1657 = vlaneseq
  %v1658 = vshrl.u32 %v1657, 7
  %v1659 = vsub.s32 0, %v1658
  %v1660 = vrot.slane %v1459, %v1659
  %1662 = vbcast.lane.b32.xlu0 %v1660, 256
  %v1663 = vpop.permute.xlu0 %1662
  %v1664 = vlaneseq
  %v1665 = vshrl.u32 %v1664, 7
  %v1666 = vsub.s32 1, %v1665
  %v1667 = vrot.slane %v1459, %v1666
  %1669 = vbcast.lane.b32.xlu0 %v1667, 256
  %v1670 = vpop.permute.xlu0 %1669
  %v1671 = vlaneseq
  %v1672 = vshrl.u32 %v1671, 7
  %v1673 = vsub.s32 2, %v1672
  %v1674 = vrot.slane %v1459, %v1673
  %1676 = vbcast.lane.b32.xlu0 %v1674, 256
  %v1677 = vpop.permute.xlu0 %1676
  %v1678 = vlaneseq
  %v1679 = vshrl.u32 %v1678, 7
  %v1680 = vsub.s32 3, %v1679
  %v1681 = vrot.slane %v1459, %v1680
  %1683 = vbcast.lane.b32.xlu0 %v1681, 256
  %v1684 = vpop.permute.xlu0 %1683
  %v1685 = vlaneseq
  %v1686 = vshrl.u32 %v1685, 7
  %v1687 = vsub.s32 4, %v1686
  %v1688 = vrot.slane %v1459, %v1687
  %1690 = vbcast.lane.b32.xlu0 %v1688, 256
  %v1691 = vpop.permute.xlu0 %1690
  %v1692 = vlaneseq
  %v1693 = vshrl.u32 %v1692, 7
  %v1694 = vsub.s32 5, %v1693
  %v1695 = vrot.slane %v1459, %v1694
  %1697 = vbcast.lane.b32.xlu0 %v1695, 256
  %v1698 = vpop.permute.xlu0 %1697
  %v1699 = vlaneseq
  %v1700 = vshrl.u32 %v1699, 7
  %v1701 = vsub.s32 6, %v1700
  %v1702 = vrot.slane %v1459, %v1701
  %1704 = vbcast.lane.b32.xlu0 %v1702, 256
  %v1705 = vpop.permute.xlu0 %1704
  %v1706 = vlaneseq
  %v1707 = vshrl.u32 %v1706, 7
  %v1708 = vsub.s32 7, %v1707
  %v1709 = vrot.slane %v1459, %v1708
  %1711 = vbcast.lane.b32.xlu0 %v1709, 256
  %v1712 = vpop.permute.xlu0 %1711
  %v1721 = vadd.f32 %v1648, %v1663
  %v1722 = vadd.f32 %v1649, %v1670
  %v1723 = vadd.f32 %v1650, %v1677
  %v1724 = vadd.f32 %v1651, %v1684
  %v1725 = vadd.f32 %v1652, %v1691
  %v1726 = vadd.f32 %v1653, %v1698
  %v1727 = vadd.f32 %v1654, %v1705
  %v1728 = vadd.f32 %v1655, %v1712
  %vm1729 = vcmp.gt.f32.partialorder %v1461, 0.0
  %v1730 = vsel %vm1729, 1, 0
  %1731 = vset.pattern.permute.xlu0 0
  %1732 = vperm.xlu0 %1731, %v1730
  %v1733 = vpop.permute.xlu0 %1732
  %vm1734 = vcmp.eq.s32.totalorder %v1733, 1
  %1743 = vset.pattern.permute.xlu0 0
  %1744 = vperm.xlu0 %1743, %v1721
  %v1745 = vpop.permute.xlu0 %1744
  %1746 = vset.pattern.permute.xlu0 0
  %1747 = vperm.xlu0 %1746, %v1722
  %v1748 = vpop.permute.xlu0 %1747
  %1749 = vset.pattern.permute.xlu0 0
  %1750 = vperm.xlu0 %1749, %v1723
  %v1751 = vpop.permute.xlu0 %1750
  %1752 = vset.pattern.permute.xlu0 0
  %1753 = vperm.xlu0 %1752, %v1724
  %v1754 = vpop.permute.xlu0 %1753
  %1755 = vset.pattern.permute.xlu0 0
  %1756 = vperm.xlu0 %1755, %v1725
  %v1757 = vpop.permute.xlu0 %1756
  %1758 = vset.pattern.permute.xlu0 0
  %1759 = vperm.xlu0 %1758, %v1726
  %v1760 = vpop.permute.xlu0 %1759
  %1761 = vset.pattern.permute.xlu0 0
  %1762 = vperm.xlu0 %1761, %v1727
  %v1763 = vpop.permute.xlu0 %1762
  %1764 = vset.pattern.permute.xlu0 0
  %1765 = vperm.xlu0 %1764, %v1728
  %v1766 = vpop.permute.xlu0 %1765
  %v1767 = vlaneseq
  %v1768 = vshrl.u32 %v1767, 7
  %v1769 = vsub.s32 %v55, %v1768
  %v1770 = vrot.slane %v1745, %v1769
  %v1771 = vlaneseq
  %v1772 = vshrl.u32 %v1771, 7
  %v1773 = vsub.s32 %v55, %v1772
  %v1774 = vrot.slane %v1748, %v1773
  %v1775 = vlaneseq
  %v1776 = vshrl.u32 %v1775, 7
  %v1777 = vsub.s32 %v55, %v1776
  %v1778 = vrot.slane %v1751, %v1777
  %v1779 = vlaneseq
  %v1780 = vshrl.u32 %v1779, 7
  %v1781 = vsub.s32 %v55, %v1780
  %v1782 = vrot.slane %v1754, %v1781
  %v1783 = vlaneseq
  %v1784 = vshrl.u32 %v1783, 7
  %v1785 = vsub.s32 %v55, %v1784
  %v1786 = vrot.slane %v1757, %v1785
  %v1787 = vlaneseq
  %v1788 = vshrl.u32 %v1787, 7
  %v1789 = vsub.s32 %v55, %v1788
  %v1790 = vrot.slane %v1760, %v1789
  %v1791 = vlaneseq
  %v1792 = vshrl.u32 %v1791, 7
  %v1793 = vsub.s32 %v55, %v1792
  %v1794 = vrot.slane %v1763, %v1793
  %v1795 = vlaneseq
  %v1796 = vshrl.u32 %v1795, 7
  %v1797 = vsub.s32 %v55, %v1796
  %v1798 = vrot.slane %v1766, %v1797
  %v1799 = vsel %vm742, %v1774, %v1770
  %v1800 = vsel %vm744, %v1778, %v1799
  %v1801 = vsel %vm746, %v1782, %v1800
  %v1802 = vsel %vm748, %v1786, %v1801
  %v1803 = vsel %vm750, %v1790, %v1802
  %v1804 = vsel %vm752, %v1794, %v1803
  %v1805 = vsel %vm754, %v1798, %v1804
  %v1807 = vsel %vm1734, %v1805, %v1457
  %s1808 = scalar_lea.vmem %s0, 40
  %v1809 = vld [vmem:[%s1808] sm:$0xff]
  %s1810 = scalar_lea.vmem %s2, 40
  %v1811 = vld [vmem:[%s1810] sm:$0xff]
  %v1813 = vcombine.high %v1807, %v1807
  %v1815 = vunpack.c.l.s4 1966171168
  %v1816 = vunpack.c.0.s8 %v1815
  %v1817 = vlaneseq
  %v1818 = vshrl.u32 %v1817, 7
  %v1819 = vsub.s32 %v1816, %v1818
  %v1820 = vrot.slane %v1807, %v1819
  %v1822 = vunpack.c.l.s4 1966171168
  %v1823 = vunpack.c.0.s8 %v1822
  %v1824 = vlaneseq
  %v1825 = vshrl.u32 %v1824, 7
  %v1826 = vsub.s32 %v1823, %v1825
  %v1827 = vrot.slane %v1813, %v1826
  %v1828 = vcombine.high %v1820, %v1820
  %v1829 = vcombine.high %v1827, %v1827
  %v1831 = vunpack.c.l.s4 1966171168
  %v1832 = vunpack.c.0.s8 %v1831
  %v1833 = vlaneseq
  %v1834 = vshrl.u32 %v1833, 7
  %v1835 = vsub.s32 %v1832, %v1834
  %v1836 = vrot.slane %v1820, %v1835
  %v1838 = vunpack.c.l.s4 1966171168
  %v1839 = vunpack.c.0.s8 %v1838
  %v1840 = vlaneseq
  %v1841 = vshrl.u32 %v1840, 7
  %v1842 = vsub.s32 %v1839, %v1841
  %v1843 = vrot.slane %v1827, %v1842
  %v1845 = vunpack.c.l.s4 1966171168
  %v1846 = vunpack.c.0.s8 %v1845
  %v1847 = vlaneseq
  %v1848 = vshrl.u32 %v1847, 7
  %v1849 = vsub.s32 %v1846, %v1848
  %v1850 = vrot.slane %v1828, %v1849
  %v1852 = vunpack.c.l.s4 1966171168
  %v1853 = vunpack.c.0.s8 %v1852
  %v1854 = vlaneseq
  %v1855 = vshrl.u32 %v1854, 7
  %v1856 = vsub.s32 %v1853, %v1855
  %v1857 = vrot.slane %v1829, %v1856
  %v1858 = vcombine.high %v1836, %v1836
  %v1859 = vcombine.high %v1843, %v1843
  %v1860 = vcombine.high %v1850, %v1850
  %v1861 = vcombine.high %v1857, %v1857
  %v1862 = vlaneseq
  %v1863 = vshrl.u32 %v1862, 7
  %v1864 = vsub.s32 0, %v1863
  %v1865 = vrot.slane %v1836, %v1864
  %v1866 = vlaneseq
  %v1867 = vshrl.u32 %v1866, 7
  %v1868 = vsub.s32 0, %v1867
  %v1869 = vrot.slane %v1850, %v1868
  %v1870 = vlaneseq
  %v1871 = vshrl.u32 %v1870, 7
  %v1872 = vsub.s32 0, %v1871
  %v1873 = vrot.slane %v1858, %v1872
  %v1874 = vlaneseq
  %v1875 = vshrl.u32 %v1874, 7
  %v1876 = vsub.s32 0, %v1875
  %v1877 = vrot.slane %v1860, %v1876
  %v1878 = vlaneseq
  %v1879 = vshrl.u32 %v1878, 7
  %v1880 = vsub.s32 0, %v1879
  %v1881 = vrot.slane %v1843, %v1880
  %v1882 = vlaneseq
  %v1883 = vshrl.u32 %v1882, 7
  %v1884 = vsub.s32 0, %v1883
  %v1885 = vrot.slane %v1857, %v1884
  %v1886 = vlaneseq
  %v1887 = vshrl.u32 %v1886, 7
  %v1888 = vsub.s32 0, %v1887
  %v1889 = vrot.slane %v1859, %v1888
  %v1890 = vlaneseq
  %v1891 = vshrl.u32 %v1890, 7
  %v1892 = vsub.s32 0, %v1891
  %v1893 = vrot.slane %v1861, %v1892
  %v1902 = vadd.f32 %v1865, %v52
  %v1903 = vadd.f32 %v1869, %v52
  %v1904 = vadd.f32 %v1873, %v52
  %v1905 = vadd.f32 %v1877, %v52
  %v1906 = vadd.f32 %v1881, %v52
  %v1907 = vadd.f32 %v1885, %v52
  %v1908 = vadd.f32 %v1889, %v52
  %v1909 = vadd.f32 %v1893, %v52
  %v1910 = vsel %vm502, %v1902, -inf
  %1911 = vmax.xlane.f32.xlu0 %v1910
  %v1912 = vpop.xlane.xlu0 %1911
  %v1913 = vsel %vm502, %v1903, -inf
  %1914 = vmax.xlane.f32.xlu0 %v1913
  %v1915 = vpop.xlane.xlu0 %1914
  %v1916 = vsel %vm502, %v1904, -inf
  %1917 = vmax.xlane.f32.xlu0 %v1916
  %v1918 = vpop.xlane.xlu0 %1917
  %v1919 = vsel %vm502, %v1905, -inf
  %1920 = vmax.xlane.f32.xlu0 %v1919
  %v1921 = vpop.xlane.xlu0 %1920
  %v1922 = vsel %vm502, %v1906, -inf
  %1923 = vmax.xlane.f32.xlu0 %v1922
  %v1924 = vpop.xlane.xlu0 %1923
  %v1925 = vsel %vm502, %v1907, -inf
  %1926 = vmax.xlane.f32.xlu0 %v1925
  %v1927 = vpop.xlane.xlu0 %1926
  %v1928 = vsel %vm502, %v1908, -inf
  %1929 = vmax.xlane.f32.xlu0 %v1928
  %v1930 = vpop.xlane.xlu0 %1929
  %v1931 = vsel %vm502, %v1909, -inf
  %1932 = vmax.xlane.f32.xlu0 %v1931
  %v1933 = vpop.xlane.xlu0 %1932
  %v1934 = vsub.f32 %v1902, %v1912
  %v1935 = vsub.f32 %v1903, %v1915
  %v1936 = vsub.f32 %v1904, %v1918
  %v1937 = vsub.f32 %v1905, %v1921
  %v1938 = vsub.f32 %v1906, %v1924
  %v1939 = vsub.f32 %v1907, %v1927
  %v1940 = vsub.f32 %v1908, %v1930
  %v1941 = vsub.f32 %v1909, %v1933
  %v1942 = vmul.f32 %v1934, 1.442695
  %v1943 = vpow.pop %v1942
  %v1944 = vmul.f32 %v1935, 1.442695
  %v1945 = vpow.pop %v1944
  %v1946 = vmul.f32 %v1936, 1.442695
  %v1947 = vpow.pop %v1946
  %v1948 = vmul.f32 %v1937, 1.442695
  %v1949 = vpow.pop %v1948
  %v1950 = vmul.f32 %v1938, 1.442695
  %v1951 = vpow.pop %v1950
  %v1952 = vmul.f32 %v1939, 1.442695
  %v1953 = vpow.pop %v1952
  %v1954 = vmul.f32 %v1940, 1.442695
  %v1955 = vpow.pop %v1954
  %v1956 = vmul.f32 %v1941, 1.442695
  %v1957 = vpow.pop %v1956
  %v1958 = vsel %vm502, %v1943, 0.0
  %1959 = vadd.xlane.f32.xlu0 %v1958
  %v1960 = vpop.xlane.xlu0 %1959
  %v1961 = vsel %vm502, %v1945, 0.0
  %1962 = vadd.xlane.f32.xlu0 %v1961
  %v1963 = vpop.xlane.xlu0 %1962
  %v1964 = vsel %vm502, %v1947, 0.0
  %1965 = vadd.xlane.f32.xlu0 %v1964
  %v1966 = vpop.xlane.xlu0 %1965
  %v1967 = vsel %vm502, %v1949, 0.0
  %1968 = vadd.xlane.f32.xlu0 %v1967
  %v1969 = vpop.xlane.xlu0 %1968
  %v1970 = vsel %vm502, %v1951, 0.0
  %1971 = vadd.xlane.f32.xlu0 %v1970
  %v1972 = vpop.xlane.xlu0 %1971
  %v1973 = vsel %vm502, %v1953, 0.0
  %1974 = vadd.xlane.f32.xlu0 %v1973
  %v1975 = vpop.xlane.xlu0 %1974
  %v1976 = vsel %vm502, %v1955, 0.0
  %1977 = vadd.xlane.f32.xlu0 %v1976
  %v1978 = vpop.xlane.xlu0 %1977
  %v1979 = vsel %vm502, %v1957, 0.0
  %1980 = vadd.xlane.f32.xlu0 %v1979
  %v1981 = vpop.xlane.xlu0 %1980
  %v1982 = vlog2.pop %v1960
  %v1983 = vmul.f32 %v1982, 0.6931472
  %v1984 = vlog2.pop %v1963
  %v1985 = vmul.f32 %v1984, 0.6931472
  %v1986 = vlog2.pop %v1966
  %v1987 = vmul.f32 %v1986, 0.6931472
  %v1988 = vlog2.pop %v1969
  %v1989 = vmul.f32 %v1988, 0.6931472
  %v1990 = vlog2.pop %v1972
  %v1991 = vmul.f32 %v1990, 0.6931472
  %v1992 = vlog2.pop %v1975
  %v1993 = vmul.f32 %v1992, 0.6931472
  %v1994 = vlog2.pop %v1978
  %v1995 = vmul.f32 %v1994, 0.6931472
  %v1996 = vlog2.pop %v1981
  %v1997 = vmul.f32 %v1996, 0.6931472
  %v1998 = vadd.f32 %v1983, %v1912
  %v1999 = vadd.f32 %v1985, %v1915
  %v2000 = vadd.f32 %v1987, %v1918
  %v2001 = vadd.f32 %v1989, %v1921
  %v2002 = vadd.f32 %v1991, %v1924
  %v2003 = vadd.f32 %v1993, %v1927
  %v2004 = vadd.f32 %v1995, %v1930
  %v2005 = vadd.f32 %v1997, %v1933
  %v2007 = vlaneseq
  %v2008 = vshrl.u32 %v2007, 7
  %v2009 = vsub.s32 0, %v2008
  %v2010 = vrot.slane %v1809, %v2009
  %2012 = vbcast.lane.b32.xlu0 %v2010, 256
  %v2013 = vpop.permute.xlu0 %2012
  %v2014 = vlaneseq
  %v2015 = vshrl.u32 %v2014, 7
  %v2016 = vsub.s32 1, %v2015
  %v2017 = vrot.slane %v1809, %v2016
  %2019 = vbcast.lane.b32.xlu0 %v2017, 256
  %v2020 = vpop.permute.xlu0 %2019
  %v2021 = vlaneseq
  %v2022 = vshrl.u32 %v2021, 7
  %v2023 = vsub.s32 2, %v2022
  %v2024 = vrot.slane %v1809, %v2023
  %2026 = vbcast.lane.b32.xlu0 %v2024, 256
  %v2027 = vpop.permute.xlu0 %2026
  %v2028 = vlaneseq
  %v2029 = vshrl.u32 %v2028, 7
  %v2030 = vsub.s32 3, %v2029
  %v2031 = vrot.slane %v1809, %v2030
  %2033 = vbcast.lane.b32.xlu0 %v2031, 256
  %v2034 = vpop.permute.xlu0 %2033
  %v2035 = vlaneseq
  %v2036 = vshrl.u32 %v2035, 7
  %v2037 = vsub.s32 4, %v2036
  %v2038 = vrot.slane %v1809, %v2037
  %2040 = vbcast.lane.b32.xlu0 %v2038, 256
  %v2041 = vpop.permute.xlu0 %2040
  %v2042 = vlaneseq
  %v2043 = vshrl.u32 %v2042, 7
  %v2044 = vsub.s32 5, %v2043
  %v2045 = vrot.slane %v1809, %v2044
  %2047 = vbcast.lane.b32.xlu0 %v2045, 256
  %v2048 = vpop.permute.xlu0 %2047
  %v2049 = vlaneseq
  %v2050 = vshrl.u32 %v2049, 7
  %v2051 = vsub.s32 6, %v2050
  %v2052 = vrot.slane %v1809, %v2051
  %2054 = vbcast.lane.b32.xlu0 %v2052, 256
  %v2055 = vpop.permute.xlu0 %2054
  %v2056 = vlaneseq
  %v2057 = vshrl.u32 %v2056, 7
  %v2058 = vsub.s32 7, %v2057
  %v2059 = vrot.slane %v1809, %v2058
  %2061 = vbcast.lane.b32.xlu0 %v2059, 256
  %v2062 = vpop.permute.xlu0 %2061
  %v2071 = vadd.f32 %v1998, %v2013
  %v2072 = vadd.f32 %v1999, %v2020
  %v2073 = vadd.f32 %v2000, %v2027
  %v2074 = vadd.f32 %v2001, %v2034
  %v2075 = vadd.f32 %v2002, %v2041
  %v2076 = vadd.f32 %v2003, %v2048
  %v2077 = vadd.f32 %v2004, %v2055
  %v2078 = vadd.f32 %v2005, %v2062
  %vm2079 = vcmp.gt.f32.partialorder %v1811, 0.0
  %v2080 = vsel %vm2079, 1, 0
  %2081 = vset.pattern.permute.xlu0 0
  %2082 = vperm.xlu0 %2081, %v2080
  %v2083 = vpop.permute.xlu0 %2082
  %vm2084 = vcmp.eq.s32.totalorder %v2083, 1
  %2093 = vset.pattern.permute.xlu0 0
  %2094 = vperm.xlu0 %2093, %v2071
  %v2095 = vpop.permute.xlu0 %2094
  %2096 = vset.pattern.permute.xlu0 0
  %2097 = vperm.xlu0 %2096, %v2072
  %v2098 = vpop.permute.xlu0 %2097
  %2099 = vset.pattern.permute.xlu0 0
  %2100 = vperm.xlu0 %2099, %v2073
  %v2101 = vpop.permute.xlu0 %2100
  %2102 = vset.pattern.permute.xlu0 0
  %2103 = vperm.xlu0 %2102, %v2074
  %v2104 = vpop.permute.xlu0 %2103
  %2105 = vset.pattern.permute.xlu0 0
  %2106 = vperm.xlu0 %2105, %v2075
  %v2107 = vpop.permute.xlu0 %2106
  %2108 = vset.pattern.permute.xlu0 0
  %2109 = vperm.xlu0 %2108, %v2076
  %v2110 = vpop.permute.xlu0 %2109
  %2111 = vset.pattern.permute.xlu0 0
  %2112 = vperm.xlu0 %2111, %v2077
  %v2113 = vpop.permute.xlu0 %2112
  %2114 = vset.pattern.permute.xlu0 0
  %2115 = vperm.xlu0 %2114, %v2078
  %v2116 = vpop.permute.xlu0 %2115
  %v2117 = vlaneseq
  %v2118 = vshrl.u32 %v2117, 7
  %v2119 = vsub.s32 %v55, %v2118
  %v2120 = vrot.slane %v2095, %v2119
  %v2121 = vlaneseq
  %v2122 = vshrl.u32 %v2121, 7
  %v2123 = vsub.s32 %v55, %v2122
  %v2124 = vrot.slane %v2098, %v2123
  %v2125 = vlaneseq
  %v2126 = vshrl.u32 %v2125, 7
  %v2127 = vsub.s32 %v55, %v2126
  %v2128 = vrot.slane %v2101, %v2127
  %v2129 = vlaneseq
  %v2130 = vshrl.u32 %v2129, 7
  %v2131 = vsub.s32 %v55, %v2130
  %v2132 = vrot.slane %v2104, %v2131
  %v2133 = vlaneseq
  %v2134 = vshrl.u32 %v2133, 7
  %v2135 = vsub.s32 %v55, %v2134
  %v2136 = vrot.slane %v2107, %v2135
  %v2137 = vlaneseq
  %v2138 = vshrl.u32 %v2137, 7
  %v2139 = vsub.s32 %v55, %v2138
  %v2140 = vrot.slane %v2110, %v2139
  %v2141 = vlaneseq
  %v2142 = vshrl.u32 %v2141, 7
  %v2143 = vsub.s32 %v55, %v2142
  %v2144 = vrot.slane %v2113, %v2143
  %v2145 = vlaneseq
  %v2146 = vshrl.u32 %v2145, 7
  %v2147 = vsub.s32 %v55, %v2146
  %v2148 = vrot.slane %v2116, %v2147
  %v2149 = vsel %vm742, %v2124, %v2120
  %v2150 = vsel %vm744, %v2128, %v2149
  %v2151 = vsel %vm746, %v2132, %v2150
  %v2152 = vsel %vm748, %v2136, %v2151
  %v2153 = vsel %vm750, %v2140, %v2152
  %v2154 = vsel %vm752, %v2144, %v2153
  %v2155 = vsel %vm754, %v2148, %v2154
  %v2157 = vsel %vm2084, %v2155, %v1807
  %s2158 = scalar_lea.vmem %s0, 48
  %v2159 = vld [vmem:[%s2158] sm:$0xff]
  %s2160 = scalar_lea.vmem %s2, 48
  %v2161 = vld [vmem:[%s2160] sm:$0xff]
  %v2163 = vcombine.high %v2157, %v2157
  %v2165 = vunpack.c.l.s4 1966171168
  %v2166 = vunpack.c.0.s8 %v2165
  %v2167 = vlaneseq
  %v2168 = vshrl.u32 %v2167, 7
  %v2169 = vsub.s32 %v2166, %v2168
  %v2170 = vrot.slane %v2157, %v2169
  %v2172 = vunpack.c.l.s4 1966171168
  %v2173 = vunpack.c.0.s8 %v2172
  %v2174 = vlaneseq
  %v2175 = vshrl.u32 %v2174, 7
  %v2176 = vsub.s32 %v2173, %v2175
  %v2177 = vrot.slane %v2163, %v2176
  %v2178 = vcombine.high %v2170, %v2170
  %v2179 = vcombine.high %v2177, %v2177
  %v2181 = vunpack.c.l.s4 1966171168
  %v2182 = vunpack.c.0.s8 %v2181
  %v2183 = vlaneseq
  %v2184 = vshrl.u32 %v2183, 7
  %v2185 = vsub.s32 %v2182, %v2184
  %v2186 = vrot.slane %v2170, %v2185
  %v2188 = vunpack.c.l.s4 1966171168
  %v2189 = vunpack.c.0.s8 %v2188
  %v2190 = vlaneseq
  %v2191 = vshrl.u32 %v2190, 7
  %v2192 = vsub.s32 %v2189, %v2191
  %v2193 = vrot.slane %v2177, %v2192
  %v2195 = vunpack.c.l.s4 1966171168
  %v2196 = vunpack.c.0.s8 %v2195
  %v2197 = vlaneseq
  %v2198 = vshrl.u32 %v2197, 7
  %v2199 = vsub.s32 %v2196, %v2198
  %v2200 = vrot.slane %v2178, %v2199
  %v2202 = vunpack.c.l.s4 1966171168
  %v2203 = vunpack.c.0.s8 %v2202
  %v2204 = vlaneseq
  %v2205 = vshrl.u32 %v2204, 7
  %v2206 = vsub.s32 %v2203, %v2205
  %v2207 = vrot.slane %v2179, %v2206
  %v2208 = vcombine.high %v2186, %v2186
  %v2209 = vcombine.high %v2193, %v2193
  %v2210 = vcombine.high %v2200, %v2200
  %v2211 = vcombine.high %v2207, %v2207
  %v2212 = vlaneseq
  %v2213 = vshrl.u32 %v2212, 7
  %v2214 = vsub.s32 0, %v2213
  %v2215 = vrot.slane %v2186, %v2214
  %v2216 = vlaneseq
  %v2217 = vshrl.u32 %v2216, 7
  %v2218 = vsub.s32 0, %v2217
  %v2219 = vrot.slane %v2200, %v2218
  %v2220 = vlaneseq
  %v2221 = vshrl.u32 %v2220, 7
  %v2222 = vsub.s32 0, %v2221
  %v2223 = vrot.slane %v2208, %v2222
  %v2224 = vlaneseq
  %v2225 = vshrl.u32 %v2224, 7
  %v2226 = vsub.s32 0, %v2225
  %v2227 = vrot.slane %v2210, %v2226
  %v2228 = vlaneseq
  %v2229 = vshrl.u32 %v2228, 7
  %v2230 = vsub.s32 0, %v2229
  %v2231 = vrot.slane %v2193, %v2230
  %v2232 = vlaneseq
  %v2233 = vshrl.u32 %v2232, 7
  %v2234 = vsub.s32 0, %v2233
  %v2235 = vrot.slane %v2207, %v2234
  %v2236 = vlaneseq
  %v2237 = vshrl.u32 %v2236, 7
  %v2238 = vsub.s32 0, %v2237
  %v2239 = vrot.slane %v2209, %v2238
  %v2240 = vlaneseq
  %v2241 = vshrl.u32 %v2240, 7
  %v2242 = vsub.s32 0, %v2241
  %v2243 = vrot.slane %v2211, %v2242
  %v2252 = vadd.f32 %v2215, %v52
  %v2253 = vadd.f32 %v2219, %v52
  %v2254 = vadd.f32 %v2223, %v52
  %v2255 = vadd.f32 %v2227, %v52
  %v2256 = vadd.f32 %v2231, %v52
  %v2257 = vadd.f32 %v2235, %v52
  %v2258 = vadd.f32 %v2239, %v52
  %v2259 = vadd.f32 %v2243, %v52
  %v2260 = vsel %vm502, %v2252, -inf
  %2261 = vmax.xlane.f32.xlu0 %v2260
  %v2262 = vpop.xlane.xlu0 %2261
  %v2263 = vsel %vm502, %v2253, -inf
  %2264 = vmax.xlane.f32.xlu0 %v2263
  %v2265 = vpop.xlane.xlu0 %2264
  %v2266 = vsel %vm502, %v2254, -inf
  %2267 = vmax.xlane.f32.xlu0 %v2266
  %v2268 = vpop.xlane.xlu0 %2267
  %v2269 = vsel %vm502, %v2255, -inf
  %2270 = vmax.xlane.f32.xlu0 %v2269
  %v2271 = vpop.xlane.xlu0 %2270
  %v2272 = vsel %vm502, %v2256, -inf
  %2273 = vmax.xlane.f32.xlu0 %v2272
  %v2274 = vpop.xlane.xlu0 %2273
  %v2275 = vsel %vm502, %v2257, -inf
  %2276 = vmax.xlane.f32.xlu0 %v2275
  %v2277 = vpop.xlane.xlu0 %2276
  %v2278 = vsel %vm502, %v2258, -inf
  %2279 = vmax.xlane.f32.xlu0 %v2278
  %v2280 = vpop.xlane.xlu0 %2279
  %v2281 = vsel %vm502, %v2259, -inf
  %2282 = vmax.xlane.f32.xlu0 %v2281
  %v2283 = vpop.xlane.xlu0 %2282
  %v2284 = vsub.f32 %v2252, %v2262
  %v2285 = vsub.f32 %v2253, %v2265
  %v2286 = vsub.f32 %v2254, %v2268
  %v2287 = vsub.f32 %v2255, %v2271
  %v2288 = vsub.f32 %v2256, %v2274
  %v2289 = vsub.f32 %v2257, %v2277
  %v2290 = vsub.f32 %v2258, %v2280
  %v2291 = vsub.f32 %v2259, %v2283
  %v2292 = vmul.f32 %v2284, 1.442695
  %v2293 = vpow.pop %v2292
  %v2294 = vmul.f32 %v2285, 1.442695
  %v2295 = vpow.pop %v2294
  %v2296 = vmul.f32 %v2286, 1.442695
  %v2297 = vpow.pop %v2296
  %v2298 = vmul.f32 %v2287, 1.442695
  %v2299 = vpow.pop %v2298
  %v2300 = vmul.f32 %v2288, 1.442695
  %v2301 = vpow.pop %v2300
  %v2302 = vmul.f32 %v2289, 1.442695
  %v2303 = vpow.pop %v2302
  %v2304 = vmul.f32 %v2290, 1.442695
  %v2305 = vpow.pop %v2304
  %v2306 = vmul.f32 %v2291, 1.442695
  %v2307 = vpow.pop %v2306
  %v2308 = vsel %vm502, %v2293, 0.0
  %2309 = vadd.xlane.f32.xlu0 %v2308
  %v2310 = vpop.xlane.xlu0 %2309
  %v2311 = vsel %vm502, %v2295, 0.0
  %2312 = vadd.xlane.f32.xlu0 %v2311
  %v2313 = vpop.xlane.xlu0 %2312
  %v2314 = vsel %vm502, %v2297, 0.0
  %2315 = vadd.xlane.f32.xlu0 %v2314
  %v2316 = vpop.xlane.xlu0 %2315
  %v2317 = vsel %vm502, %v2299, 0.0
  %2318 = vadd.xlane.f32.xlu0 %v2317
  %v2319 = vpop.xlane.xlu0 %2318
  %v2320 = vsel %vm502, %v2301, 0.0
  %2321 = vadd.xlane.f32.xlu0 %v2320
  %v2322 = vpop.xlane.xlu0 %2321
  %v2323 = vsel %vm502, %v2303, 0.0
  %2324 = vadd.xlane.f32.xlu0 %v2323
  %v2325 = vpop.xlane.xlu0 %2324
  %v2326 = vsel %vm502, %v2305, 0.0
  %2327 = vadd.xlane.f32.xlu0 %v2326
  %v2328 = vpop.xlane.xlu0 %2327
  %v2329 = vsel %vm502, %v2307, 0.0
  %2330 = vadd.xlane.f32.xlu0 %v2329
  %v2331 = vpop.xlane.xlu0 %2330
  %v2332 = vlog2.pop %v2310
  %v2333 = vmul.f32 %v2332, 0.6931472
  %v2334 = vlog2.pop %v2313
  %v2335 = vmul.f32 %v2334, 0.6931472
  %v2336 = vlog2.pop %v2316
  %v2337 = vmul.f32 %v2336, 0.6931472
  %v2338 = vlog2.pop %v2319
  %v2339 = vmul.f32 %v2338, 0.6931472
  %v2340 = vlog2.pop %v2322
  %v2341 = vmul.f32 %v2340, 0.6931472
  %v2342 = vlog2.pop %v2325
  %v2343 = vmul.f32 %v2342, 0.6931472
  %v2344 = vlog2.pop %v2328
  %v2345 = vmul.f32 %v2344, 0.6931472
  %v2346 = vlog2.pop %v2331
  %v2347 = vmul.f32 %v2346, 0.6931472
  %v2348 = vadd.f32 %v2333, %v2262
  %v2349 = vadd.f32 %v2335, %v2265
  %v2350 = vadd.f32 %v2337, %v2268
  %v2351 = vadd.f32 %v2339, %v2271
  %v2352 = vadd.f32 %v2341, %v2274
  %v2353 = vadd.f32 %v2343, %v2277
  %v2354 = vadd.f32 %v2345, %v2280
  %v2355 = vadd.f32 %v2347, %v2283
  %v2357 = vlaneseq
  %v2358 = vshrl.u32 %v2357, 7
  %v2359 = vsub.s32 0, %v2358
  %v2360 = vrot.slane %v2159, %v2359
  %2362 = vbcast.lane.b32.xlu0 %v2360, 256
  %v2363 = vpop.permute.xlu0 %2362
  %v2364 = vlaneseq
  %v2365 = vshrl.u32 %v2364, 7
  %v2366 = vsub.s32 1, %v2365
  %v2367 = vrot.slane %v2159, %v2366
  %2369 = vbcast.lane.b32.xlu0 %v2367, 256
  %v2370 = vpop.permute.xlu0 %2369
  %v2371 = vlaneseq
  %v2372 = vshrl.u32 %v2371, 7
  %v2373 = vsub.s32 2, %v2372
  %v2374 = vrot.slane %v2159, %v2373
  %2376 = vbcast.lane.b32.xlu0 %v2374, 256
  %v2377 = vpop.permute.xlu0 %2376
  %v2378 = vlaneseq
  %v2379 = vshrl.u32 %v2378, 7
  %v2380 = vsub.s32 3, %v2379
  %v2381 = vrot.slane %v2159, %v2380
  %2383 = vbcast.lane.b32.xlu0 %v2381, 256
  %v2384 = vpop.permute.xlu0 %2383
  %v2385 = vlaneseq
  %v2386 = vshrl.u32 %v2385, 7
  %v2387 = vsub.s32 4, %v2386
  %v2388 = vrot.slane %v2159, %v2387
  %2390 = vbcast.lane.b32.xlu0 %v2388, 256
  %v2391 = vpop.permute.xlu0 %2390
  %v2392 = vlaneseq
  %v2393 = vshrl.u32 %v2392, 7
  %v2394 = vsub.s32 5, %v2393
  %v2395 = vrot.slane %v2159, %v2394
  %2397 = vbcast.lane.b32.xlu0 %v2395, 256
  %v2398 = vpop.permute.xlu0 %2397
  %v2399 = vlaneseq
  %v2400 = vshrl.u32 %v2399, 7
  %v2401 = vsub.s32 6, %v2400
  %v2402 = vrot.slane %v2159, %v2401
  %2404 = vbcast.lane.b32.xlu0 %v2402, 256
  %v2405 = vpop.permute.xlu0 %2404
  %v2406 = vlaneseq
  %v2407 = vshrl.u32 %v2406, 7
  %v2408 = vsub.s32 7, %v2407
  %v2409 = vrot.slane %v2159, %v2408
  %2411 = vbcast.lane.b32.xlu0 %v2409, 256
  %v2412 = vpop.permute.xlu0 %2411
  %v2421 = vadd.f32 %v2348, %v2363
  %v2422 = vadd.f32 %v2349, %v2370
  %v2423 = vadd.f32 %v2350, %v2377
  %v2424 = vadd.f32 %v2351, %v2384
  %v2425 = vadd.f32 %v2352, %v2391
  %v2426 = vadd.f32 %v2353, %v2398
  %v2427 = vadd.f32 %v2354, %v2405
  %v2428 = vadd.f32 %v2355, %v2412
  %vm2429 = vcmp.gt.f32.partialorder %v2161, 0.0
  %v2430 = vsel %vm2429, 1, 0
  %2431 = vset.pattern.permute.xlu0 0
  %2432 = vperm.xlu0 %2431, %v2430
  %v2433 = vpop.permute.xlu0 %2432
  %vm2434 = vcmp.eq.s32.totalorder %v2433, 1
  %2443 = vset.pattern.permute.xlu0 0
  %2444 = vperm.xlu0 %2443, %v2421
  %v2445 = vpop.permute.xlu0 %2444
  %2446 = vset.pattern.permute.xlu0 0
  %2447 = vperm.xlu0 %2446, %v2422
  %v2448 = vpop.permute.xlu0 %2447
  %2449 = vset.pattern.permute.xlu0 0
  %2450 = vperm.xlu0 %2449, %v2423
  %v2451 = vpop.permute.xlu0 %2450
  %2452 = vset.pattern.permute.xlu0 0
  %2453 = vperm.xlu0 %2452, %v2424
  %v2454 = vpop.permute.xlu0 %2453
  %2455 = vset.pattern.permute.xlu0 0
  %2456 = vperm.xlu0 %2455, %v2425
  %v2457 = vpop.permute.xlu0 %2456
  %2458 = vset.pattern.permute.xlu0 0
  %2459 = vperm.xlu0 %2458, %v2426
  %v2460 = vpop.permute.xlu0 %2459
  %2461 = vset.pattern.permute.xlu0 0
  %2462 = vperm.xlu0 %2461, %v2427
  %v2463 = vpop.permute.xlu0 %2462
  %2464 = vset.pattern.permute.xlu0 0
  %2465 = vperm.xlu0 %2464, %v2428
  %v2466 = vpop.permute.xlu0 %2465
  %v2467 = vlaneseq
  %v2468 = vshrl.u32 %v2467, 7
  %v2469 = vsub.s32 %v55, %v2468
  %v2470 = vrot.slane %v2445, %v2469
  %v2471 = vlaneseq
  %v2472 = vshrl.u32 %v2471, 7
  %v2473 = vsub.s32 %v55, %v2472
  %v2474 = vrot.slane %v2448, %v2473
  %v2475 = vlaneseq
  %v2476 = vshrl.u32 %v2475, 7
  %v2477 = vsub.s32 %v55, %v2476
  %v2478 = vrot.slane %v2451, %v2477
  %v2479 = vlaneseq
  %v2480 = vshrl.u32 %v2479, 7
  %v2481 = vsub.s32 %v55, %v2480
  %v2482 = vrot.slane %v2454, %v2481
  %v2483 = vlaneseq
  %v2484 = vshrl.u32 %v2483, 7
  %v2485 = vsub.s32 %v55, %v2484
  %v2486 = vrot.slane %v2457, %v2485
  %v2487 = vlaneseq
  %v2488 = vshrl.u32 %v2487, 7
  %v2489 = vsub.s32 %v55, %v2488
  %v2490 = vrot.slane %v2460, %v2489
  %v2491 = vlaneseq
  %v2492 = vshrl.u32 %v2491, 7
  %v2493 = vsub.s32 %v55, %v2492
  %v2494 = vrot.slane %v2463, %v2493
  %v2495 = vlaneseq
  %v2496 = vshrl.u32 %v2495, 7
  %v2497 = vsub.s32 %v55, %v2496
  %v2498 = vrot.slane %v2466, %v2497
  %v2499 = vsel %vm742, %v2474, %v2470
  %v2500 = vsel %vm744, %v2478, %v2499
  %v2501 = vsel %vm746, %v2482, %v2500
  %v2502 = vsel %vm748, %v2486, %v2501
  %v2503 = vsel %vm750, %v2490, %v2502
  %v2504 = vsel %vm752, %v2494, %v2503
  %v2505 = vsel %vm754, %v2498, %v2504
  %v2507 = vsel %vm2434, %v2505, %v2157
  %s2508 = scalar_lea.vmem %s0, 56
  %v2509 = vld [vmem:[%s2508] sm:$0xff]
  %s2510 = scalar_lea.vmem %s2, 56
  %v2511 = vld [vmem:[%s2510] sm:$0xff]
  %v2513 = vcombine.high %v2507, %v2507
  %v2515 = vunpack.c.l.s4 1966171168
  %v2516 = vunpack.c.0.s8 %v2515
  %v2517 = vlaneseq
  %v2518 = vshrl.u32 %v2517, 7
  %v2519 = vsub.s32 %v2516, %v2518
  %v2520 = vrot.slane %v2507, %v2519
  %v2522 = vunpack.c.l.s4 1966171168
  %v2523 = vunpack.c.0.s8 %v2522
  %v2524 = vlaneseq
  %v2525 = vshrl.u32 %v2524, 7
  %v2526 = vsub.s32 %v2523, %v2525
  %v2527 = vrot.slane %v2513, %v2526
  %v2528 = vcombine.high %v2520, %v2520
  %v2529 = vcombine.high %v2527, %v2527
  %v2531 = vunpack.c.l.s4 1966171168
  %v2532 = vunpack.c.0.s8 %v2531
  %v2533 = vlaneseq
  %v2534 = vshrl.u32 %v2533, 7
  %v2535 = vsub.s32 %v2532, %v2534
  %v2536 = vrot.slane %v2520, %v2535
  %v2538 = vunpack.c.l.s4 1966171168
  %v2539 = vunpack.c.0.s8 %v2538
  %v2540 = vlaneseq
  %v2541 = vshrl.u32 %v2540, 7
  %v2542 = vsub.s32 %v2539, %v2541
  %v2543 = vrot.slane %v2527, %v2542
  %v2545 = vunpack.c.l.s4 1966171168
  %v2546 = vunpack.c.0.s8 %v2545
  %v2547 = vlaneseq
  %v2548 = vshrl.u32 %v2547, 7
  %v2549 = vsub.s32 %v2546, %v2548
  %v2550 = vrot.slane %v2528, %v2549
  %v2552 = vunpack.c.l.s4 1966171168
  %v2553 = vunpack.c.0.s8 %v2552
  %v2554 = vlaneseq
  %v2555 = vshrl.u32 %v2554, 7
  %v2556 = vsub.s32 %v2553, %v2555
  %v2557 = vrot.slane %v2529, %v2556
  %v2558 = vcombine.high %v2536, %v2536
  %v2559 = vcombine.high %v2543, %v2543
  %v2560 = vcombine.high %v2550, %v2550
  %v2561 = vcombine.high %v2557, %v2557
  %v2562 = vlaneseq
  %v2563 = vshrl.u32 %v2562, 7
  %v2564 = vsub.s32 0, %v2563
  %v2565 = vrot.slane %v2536, %v2564
  %v2566 = vlaneseq
  %v2567 = vshrl.u32 %v2566, 7
  %v2568 = vsub.s32 0, %v2567
  %v2569 = vrot.slane %v2550, %v2568
  %v2570 = vlaneseq
  %v2571 = vshrl.u32 %v2570, 7
  %v2572 = vsub.s32 0, %v2571
  %v2573 = vrot.slane %v2558, %v2572
  %v2574 = vlaneseq
  %v2575 = vshrl.u32 %v2574, 7
  %v2576 = vsub.s32 0, %v2575
  %v2577 = vrot.slane %v2560, %v2576
  %v2578 = vlaneseq
  %v2579 = vshrl.u32 %v2578, 7
  %v2580 = vsub.s32 0, %v2579
  %v2581 = vrot.slane %v2543, %v2580
  %v2582 = vlaneseq
  %v2583 = vshrl.u32 %v2582, 7
  %v2584 = vsub.s32 0, %v2583
  %v2585 = vrot.slane %v2557, %v2584
  %v2586 = vlaneseq
  %v2587 = vshrl.u32 %v2586, 7
  %v2588 = vsub.s32 0, %v2587
  %v2589 = vrot.slane %v2559, %v2588
  %v2590 = vlaneseq
  %v2591 = vshrl.u32 %v2590, 7
  %v2592 = vsub.s32 0, %v2591
  %v2593 = vrot.slane %v2561, %v2592
  %v2602 = vadd.f32 %v2565, %v52
  %v2603 = vadd.f32 %v2569, %v52
  %v2604 = vadd.f32 %v2573, %v52
  %v2605 = vadd.f32 %v2577, %v52
  %v2606 = vadd.f32 %v2581, %v52
  %v2607 = vadd.f32 %v2585, %v52
  %v2608 = vadd.f32 %v2589, %v52
  %v2609 = vadd.f32 %v2593, %v52
  %v2610 = vsel %vm502, %v2602, -inf
  %2611 = vmax.xlane.f32.xlu0 %v2610
  %v2612 = vpop.xlane.xlu0 %2611
  %v2613 = vsel %vm502, %v2603, -inf
  %2614 = vmax.xlane.f32.xlu0 %v2613
  %v2615 = vpop.xlane.xlu0 %2614
  %v2616 = vsel %vm502, %v2604, -inf
  %2617 = vmax.xlane.f32.xlu0 %v2616
  %v2618 = vpop.xlane.xlu0 %2617
  %v2619 = vsel %vm502, %v2605, -inf
  %2620 = vmax.xlane.f32.xlu0 %v2619
  %v2621 = vpop.xlane.xlu0 %2620
  %v2622 = vsel %vm502, %v2606, -inf
  %2623 = vmax.xlane.f32.xlu0 %v2622
  %v2624 = vpop.xlane.xlu0 %2623
  %v2625 = vsel %vm502, %v2607, -inf
  %2626 = vmax.xlane.f32.xlu0 %v2625
  %v2627 = vpop.xlane.xlu0 %2626
  %v2628 = vsel %vm502, %v2608, -inf
  %2629 = vmax.xlane.f32.xlu0 %v2628
  %v2630 = vpop.xlane.xlu0 %2629
  %v2631 = vsel %vm502, %v2609, -inf
  %2632 = vmax.xlane.f32.xlu0 %v2631
  %v2633 = vpop.xlane.xlu0 %2632
  %v2634 = vsub.f32 %v2602, %v2612
  %v2635 = vsub.f32 %v2603, %v2615
  %v2636 = vsub.f32 %v2604, %v2618
  %v2637 = vsub.f32 %v2605, %v2621
  %v2638 = vsub.f32 %v2606, %v2624
  %v2639 = vsub.f32 %v2607, %v2627
  %v2640 = vsub.f32 %v2608, %v2630
  %v2641 = vsub.f32 %v2609, %v2633
  %v2642 = vmul.f32 %v2634, 1.442695
  %v2643 = vpow.pop %v2642
  %v2644 = vmul.f32 %v2635, 1.442695
  %v2645 = vpow.pop %v2644
  %v2646 = vmul.f32 %v2636, 1.442695
  %v2647 = vpow.pop %v2646
  %v2648 = vmul.f32 %v2637, 1.442695
  %v2649 = vpow.pop %v2648
  %v2650 = vmul.f32 %v2638, 1.442695
  %v2651 = vpow.pop %v2650
  %v2652 = vmul.f32 %v2639, 1.442695
  %v2653 = vpow.pop %v2652
  %v2654 = vmul.f32 %v2640, 1.442695
  %v2655 = vpow.pop %v2654
  %v2656 = vmul.f32 %v2641, 1.442695
  %v2657 = vpow.pop %v2656
  %v2658 = vsel %vm502, %v2643, 0.0
  %2659 = vadd.xlane.f32.xlu0 %v2658
  %v2660 = vpop.xlane.xlu0 %2659
  %v2661 = vsel %vm502, %v2645, 0.0
  %2662 = vadd.xlane.f32.xlu0 %v2661
  %v2663 = vpop.xlane.xlu0 %2662
  %v2664 = vsel %vm502, %v2647, 0.0
  %2665 = vadd.xlane.f32.xlu0 %v2664
  %v2666 = vpop.xlane.xlu0 %2665
  %v2667 = vsel %vm502, %v2649, 0.0
  %2668 = vadd.xlane.f32.xlu0 %v2667
  %v2669 = vpop.xlane.xlu0 %2668
  %v2670 = vsel %vm502, %v2651, 0.0
  %2671 = vadd.xlane.f32.xlu0 %v2670
  %v2672 = vpop.xlane.xlu0 %2671
  %v2673 = vsel %vm502, %v2653, 0.0
  %2674 = vadd.xlane.f32.xlu0 %v2673
  %v2675 = vpop.xlane.xlu0 %2674
  %v2676 = vsel %vm502, %v2655, 0.0
  %2677 = vadd.xlane.f32.xlu0 %v2676
  %v2678 = vpop.xlane.xlu0 %2677
  %v2679 = vsel %vm502, %v2657, 0.0
  %2680 = vadd.xlane.f32.xlu0 %v2679
  %v2681 = vpop.xlane.xlu0 %2680
  %v2682 = vlog2.pop %v2660
  %v2683 = vmul.f32 %v2682, 0.6931472
  %v2684 = vlog2.pop %v2663
  %v2685 = vmul.f32 %v2684, 0.6931472
  %v2686 = vlog2.pop %v2666
  %v2687 = vmul.f32 %v2686, 0.6931472
  %v2688 = vlog2.pop %v2669
  %v2689 = vmul.f32 %v2688, 0.6931472
  %v2690 = vlog2.pop %v2672
  %v2691 = vmul.f32 %v2690, 0.6931472
  %v2692 = vlog2.pop %v2675
  %v2693 = vmul.f32 %v2692, 0.6931472
  %v2694 = vlog2.pop %v2678
  %v2695 = vmul.f32 %v2694, 0.6931472
  %v2696 = vlog2.pop %v2681
  %v2697 = vmul.f32 %v2696, 0.6931472
  %v2698 = vadd.f32 %v2683, %v2612
  %v2699 = vadd.f32 %v2685, %v2615
  %v2700 = vadd.f32 %v2687, %v2618
  %v2701 = vadd.f32 %v2689, %v2621
  %v2702 = vadd.f32 %v2691, %v2624
  %v2703 = vadd.f32 %v2693, %v2627
  %v2704 = vadd.f32 %v2695, %v2630
  %v2705 = vadd.f32 %v2697, %v2633
  %v2707 = vlaneseq
  %v2708 = vshrl.u32 %v2707, 7
  %v2709 = vsub.s32 0, %v2708
  %v2710 = vrot.slane %v2509, %v2709
  %2712 = vbcast.lane.b32.xlu0 %v2710, 256
  %v2713 = vpop.permute.xlu0 %2712
  %v2714 = vlaneseq
  %v2715 = vshrl.u32 %v2714, 7
  %v2716 = vsub.s32 1, %v2715
  %v2717 = vrot.slane %v2509, %v2716
  %2719 = vbcast.lane.b32.xlu0 %v2717, 256
  %v2720 = vpop.permute.xlu0 %2719
  %v2721 = vlaneseq
  %v2722 = vshrl.u32 %v2721, 7
  %v2723 = vsub.s32 2, %v2722
  %v2724 = vrot.slane %v2509, %v2723
  %2726 = vbcast.lane.b32.xlu0 %v2724, 256
  %v2727 = vpop.permute.xlu0 %2726
  %v2728 = vlaneseq
  %v2729 = vshrl.u32 %v2728, 7
  %v2730 = vsub.s32 3, %v2729
  %v2731 = vrot.slane %v2509, %v2730
  %2733 = vbcast.lane.b32.xlu0 %v2731, 256
  %v2734 = vpop.permute.xlu0 %2733
  %v2735 = vlaneseq
  %v2736 = vshrl.u32 %v2735, 7
  %v2737 = vsub.s32 4, %v2736
  %v2738 = vrot.slane %v2509, %v2737
  %2740 = vbcast.lane.b32.xlu0 %v2738, 256
  %v2741 = vpop.permute.xlu0 %2740
  %v2742 = vlaneseq
  %v2743 = vshrl.u32 %v2742, 7
  %v2744 = vsub.s32 5, %v2743
  %v2745 = vrot.slane %v2509, %v2744
  %2747 = vbcast.lane.b32.xlu0 %v2745, 256
  %v2748 = vpop.permute.xlu0 %2747
  %v2749 = vlaneseq
  %v2750 = vshrl.u32 %v2749, 7
  %v2751 = vsub.s32 6, %v2750
  %v2752 = vrot.slane %v2509, %v2751
  %2754 = vbcast.lane.b32.xlu0 %v2752, 256
  %v2755 = vpop.permute.xlu0 %2754
  %v2756 = vlaneseq
  %v2757 = vshrl.u32 %v2756, 7
  %v2758 = vsub.s32 7, %v2757
  %v2759 = vrot.slane %v2509, %v2758
  %2761 = vbcast.lane.b32.xlu0 %v2759, 256
  %v2762 = vpop.permute.xlu0 %2761
  %v2771 = vadd.f32 %v2698, %v2713
  %v2772 = vadd.f32 %v2699, %v2720
  %v2773 = vadd.f32 %v2700, %v2727
  %v2774 = vadd.f32 %v2701, %v2734
  %v2775 = vadd.f32 %v2702, %v2741
  %v2776 = vadd.f32 %v2703, %v2748
  %v2777 = vadd.f32 %v2704, %v2755
  %v2778 = vadd.f32 %v2705, %v2762
  %vm2779 = vcmp.gt.f32.partialorder %v2511, 0.0
  %v2780 = vsel %vm2779, 1, 0
  %2781 = vset.pattern.permute.xlu0 0
  %2782 = vperm.xlu0 %2781, %v2780
  %v2783 = vpop.permute.xlu0 %2782
  %vm2784 = vcmp.eq.s32.totalorder %v2783, 1
  %2793 = vset.pattern.permute.xlu0 0
  %2794 = vperm.xlu0 %2793, %v2771
  %v2795 = vpop.permute.xlu0 %2794
  %2796 = vset.pattern.permute.xlu0 0
  %2797 = vperm.xlu0 %2796, %v2772
  %v2798 = vpop.permute.xlu0 %2797
  %2799 = vset.pattern.permute.xlu0 0
  %2800 = vperm.xlu0 %2799, %v2773
  %v2801 = vpop.permute.xlu0 %2800
  %2802 = vset.pattern.permute.xlu0 0
  %2803 = vperm.xlu0 %2802, %v2774
  %v2804 = vpop.permute.xlu0 %2803
  %2805 = vset.pattern.permute.xlu0 0
  %2806 = vperm.xlu0 %2805, %v2775
  %v2807 = vpop.permute.xlu0 %2806
  %2808 = vset.pattern.permute.xlu0 0
  %2809 = vperm.xlu0 %2808, %v2776
  %v2810 = vpop.permute.xlu0 %2809
  %2811 = vset.pattern.permute.xlu0 0
  %2812 = vperm.xlu0 %2811, %v2777
  %v2813 = vpop.permute.xlu0 %2812
  %2814 = vset.pattern.permute.xlu0 0
  %2815 = vperm.xlu0 %2814, %v2778
  %v2816 = vpop.permute.xlu0 %2815
  %v2817 = vlaneseq
  %v2818 = vshrl.u32 %v2817, 7
  %v2819 = vsub.s32 %v55, %v2818
  %v2820 = vrot.slane %v2795, %v2819
  %v2821 = vlaneseq
  %v2822 = vshrl.u32 %v2821, 7
  %v2823 = vsub.s32 %v55, %v2822
  %v2824 = vrot.slane %v2798, %v2823
  %v2825 = vlaneseq
  %v2826 = vshrl.u32 %v2825, 7
  %v2827 = vsub.s32 %v55, %v2826
  %v2828 = vrot.slane %v2801, %v2827
  %v2829 = vlaneseq
  %v2830 = vshrl.u32 %v2829, 7
  %v2831 = vsub.s32 %v55, %v2830
  %v2832 = vrot.slane %v2804, %v2831
  %v2833 = vlaneseq
  %v2834 = vshrl.u32 %v2833, 7
  %v2835 = vsub.s32 %v55, %v2834
  %v2836 = vrot.slane %v2807, %v2835
  %v2837 = vlaneseq
  %v2838 = vshrl.u32 %v2837, 7
  %v2839 = vsub.s32 %v55, %v2838
  %v2840 = vrot.slane %v2810, %v2839
  %v2841 = vlaneseq
  %v2842 = vshrl.u32 %v2841, 7
  %v2843 = vsub.s32 %v55, %v2842
  %v2844 = vrot.slane %v2813, %v2843
  %v2845 = vlaneseq
  %v2846 = vshrl.u32 %v2845, 7
  %v2847 = vsub.s32 %v55, %v2846
  %v2848 = vrot.slane %v2816, %v2847
  %v2849 = vsel %vm742, %v2824, %v2820
  %v2850 = vsel %vm744, %v2828, %v2849
  %v2851 = vsel %vm746, %v2832, %v2850
  %v2852 = vsel %vm748, %v2836, %v2851
  %v2853 = vsel %vm750, %v2840, %v2852
  %v2854 = vsel %vm752, %v2844, %v2853
  %v2855 = vsel %vm754, %v2848, %v2854
  %v2857 = vsel %vm2784, %v2855, %v2507
  %v2858 = vadd.f32 %v2857, %v390
  %v2859 = vsel %vm112, %v2858, -inf
  %2860 = vmax.xlane.f32.xlu0 %v2859
  %v2861 = vpop.xlane.xlu0 %2860
  %v2862 = vsub.f32 %v2858, %v2861
  %v2863 = vmul.f32 %v2862, 1.442695
  %v2864 = vpow.pop %v2863
  %v2865 = vsel %vm112, %v2864, 0.0
  %2866 = vadd.xlane.f32.xlu0 %v2865
  %v2867 = vpop.xlane.xlu0 %2866
  %v2868 = vlog2.pop %v2867
  %v2869 = vmul.f32 %v2868, 0.6931472
  %v2870 = vadd.f32 %v2869, %v2861
  %v2871 = vsub.f32 %v398, %v2870
  %v2872 = vmul.f32 %v2871, %v42
  %2873 = vst.msk [vmem:[%s7] sm:$0xff] %vm145, %v2872
  // Predicated region
  $region30: #{crf_loss_pallas.1} parent=0 // pred_check
    _
  $region31: #{crf_loss_pallas.1} parent=0 // pred_check_branch
    %2875 = sbr.rel (0) target = $region33
  $region32: #{crf_loss_pallas.1} parent=0 // pred_region
    _
  $region33: #{crf_loss_pallas.1} parent=0 // pred_fallthru
    _
  // Predicated region
  $region34: #{crf_loss_pallas.1} parent=0 // pred_check
    _
  $region35: #{crf_loss_pallas.1} parent=0 // pred_check_branch
    %2877 = sbr.rel (0) target = $region37
  $region36: #{crf_loss_pallas.1} parent=0 // pred_region
    _
  $region37: #{crf_loss_pallas.1} parent=0 // pred_fallthru
    _

</llo_original>
